<compile_context>
chip_gen: v7x
topology: tpu7x:2x2x1
jax: 0.10.0
libtpu: 0.0.40
codegen_flags: <defaults>
</compile_context>

<pallas_src>
import functools

import numpy as np
import jax
import jax.numpy as jnp
from jax import lax
from jax.experimental import pallas as pl
from jax.experimental.pallas import tpu as pltpu


def _mean2px_pad_kernel(x_ref, code_ref, o_ref, *, pad, H, W, TB):
    """Build one (TB, C, Hp, Wp) padded tile in-register, store it once."""
    p = pad
    Hp, Wp = H + 2 * p, W + 2 * p
    x = x_ref[...]                                 # (TB, C, H, W)
    C = x.shape[1]
    half = jnp.asarray(0.5, x.dtype)

    # 2-pixel edge means (== the grouped 2x1 / 1x2 averaging convs).
    top_mean = (x[:, :, 0:1, :] + x[:, :, 1:2, :]) * half            # (TB,C,1,W)
    bot_mean = (x[:, :, H - 2:H - 1, :] + x[:, :, H - 1:H, :]) * half
    left_mean = (x[:, :, :, 0:1] + x[:, :, :, 1:2]) * half           # (TB,C,H,1)
    right_mean = (x[:, :, :, W - 2:W - 1, ] + x[:, :, :, W - 1:W]) * half

    # Replicate-pad corners (these survive the edge-mean overwrites).
    tl = x[:, :, 0:1, 0:1]
    tr = x[:, :, 0:1, W - 1:W]
    bl = x[:, :, H - 1:H, 0:1]
    br = x[:, :, H - 1:H, W - 1:W]

    # Middle band: [left_mean | x | right_mean] -> (TB, C, H, Wp)
    mid = jnp.concatenate(
        [jnp.broadcast_to(left_mean, (TB, C, H, p)),
         x,
         jnp.broadcast_to(right_mean, (TB, C, H, p))], axis=3)
    # Top / bottom pad rows (uniform across the p pad rows before zeroing).
    top_row = jnp.concatenate(
        [jnp.broadcast_to(tl, (TB, C, 1, p)),
         top_mean,
         jnp.broadcast_to(tr, (TB, C, 1, p))], axis=3)               # (TB,C,1,Wp)
    bot_row = jnp.concatenate(
        [jnp.broadcast_to(bl, (TB, C, 1, p)),
         bot_mean,
         jnp.broadcast_to(br, (TB, C, 1, p))], axis=3)               # (TB,C,1,Wp)

    padded = jnp.concatenate(
        [jnp.broadcast_to(top_row, (TB, C, p, Wp)),
         mid,
         jnp.broadcast_to(bot_row, (TB, C, p, Wp))], axis=2)         # (TB,C,Hp,Wp)

    # Zero image-boundary rows/cols for patches that sit on the image border.
    # code bits: 1=top-row patch, 2=bottom-row, 4=left-col, 8=right-col.
    code = code_ref[...]                                             # (TB,1,1,1) i32
    is_top = (code & 1) > 0
    is_bot = (code & 2) > 0
    is_left = (code & 4) > 0
    is_right = (code & 8) > 0
    hi = lax.broadcasted_iota(jnp.int32, (1, 1, Hp, Wp), 2)
    wi = lax.broadcasted_iota(jnp.int32, (1, 1, Hp, Wp), 3)
    zero_mask = ((is_top & (hi < p))
                 | (is_bot & (hi == H + p))      # PyTorch zeros only row H+pad
                 | (is_left & (wi < p))
                 | (is_right & (wi >= W + p)))
    zero_mask = jnp.broadcast_to(zero_mask, padded.shape)

    # Single full-tile store.
    o_ref[...] = jnp.where(zero_mask, jnp.asarray(0, padded.dtype), padded)


def _pick_tb(b, per_elem_bytes, target_tile_bytes):
    """Largest divisor of b whose tile fits the byte budget, keeping >=2 blocks."""
    divisors = [d for d in range(1, b + 1) if b % d == 0]
    fitting = [d for d in divisors if d * per_elem_bytes <= target_tile_bytes]
    if not fitting:
        return 1
    multi_block = [d for d in fitting if b // d >= 2]
    return max(multi_block) if multi_block else max(fitting)


def mean_2px_pad2d(x, padding, num_patches, *, target_tile_bytes=4 << 20):
    """Pallas implementation of Mean_2px_Pad2d.forward.

    x: (b, C, H, W) with b divisible by num_patches**2.
    Returns (b, C, H + 2*padding, W + 2*padding), same dtype as x.
    """
    b, C, H, W = x.shape
    P = num_patches
    p = padding
    assert p >= 1, "Mean_2px_Pad2d requires padding >= 1"
    assert H >= 2 and W >= 2, "needs at least 2 pixels per spatial dim"
    assert b % (P * P) == 0, "batch must be B * num_patches**2"
    Hp, Wp = H + 2 * p, W + 2 * p

    itemsize = jnp.dtype(x.dtype).itemsize
    per_elem_bytes = C * (H * W + Hp * Wp) * itemsize
    TB = _pick_tb(b, per_elem_bytes, target_tile_bytes)
    grid = (b // TB,)

    # Precomputed per-patch border code (host side, tiny).
    idx = np.arange(b)
    in_img = idx % (P * P)
    prow = in_img // P
    pcol = in_img % P
    code = ((prow == 0).astype(np.int32)
            | ((prow == P - 1).astype(np.int32) << 1)
            | ((pcol == 0).astype(np.int32) << 2)
            | ((pcol == P - 1).astype(np.int32) << 3)).astype(np.int32)
    code = jnp.asarray(code.reshape(b, 1, 1, 1))

    kernel = functools.partial(_mean2px_pad_kernel, pad=p, H=H, W=W, TB=TB)

    bytes_accessed = (b * C * H * W + b * C * Hp * Wp) * itemsize + b * 4
    flops = 2 * b * C * (2 * W + 2 * H)   # the four edge means

    return pl.pallas_call(
        kernel,
        out_shape=jax.ShapeDtypeStruct((b, C, Hp, Wp), x.dtype),
        grid_spec=pltpu.PrefetchScalarGridSpec(
            num_scalar_prefetch=0,
            grid=grid,
            in_specs=[
                # full (C, H, W) planes for TB patches per step; last two dims
                # equal the full array dims so the (8,128) rule is satisfied.
                pl.BlockSpec((TB, C, H, W), lambda i: (i, 0, 0, 0)),
                pl.BlockSpec((TB, 1, 1, 1), lambda i: (i, 0, 0, 0)),
            ],
            out_specs=pl.BlockSpec((TB, C, Hp, Wp), lambda i: (i, 0, 0, 0)),
        ),
        compiler_params=pltpu.CompilerParams(
            dimension_semantics=("parallel",),
            vmem_limit_bytes=48 << 20,
        ),
        cost_estimate=pl.CostEstimate(
            flops=flops, transcendentals=0, bytes_accessed=bytes_accessed),
    )(x, code)


def _reference(x, padding, num_patches):
    """Pure-JAX mirror of the PyTorch Mean_2px_Pad2d.forward."""
    b, C, H, W = x.shape
    P = num_patches
    p = padding
    top_pad = 0.5 * (x[:, :, 0:1, :] + x[:, :, 1:2, :])
    bot_pad = 0.5 * (x[:, :, H - 2:H - 1, :] + x[:, :, H - 1:H, :])
    left_pad = 0.5 * (x[:, :, :, 0:1] + x[:, :, :, 1:2])
    right_pad = 0.5 * (x[:, :, :, W - 2:W - 1] + x[:, :, :, W - 1:W])
    out = jnp.pad(x, ((0, 0), (0, 0), (p, p), (p, p)), mode="edge")
    out = out.at[:, :, :p, p:W + p].set(jnp.broadcast_to(top_pad, (b, C, p, W)))
    out = out.at[:, :, H + p:, p:W + p].set(jnp.broadcast_to(bot_pad, (b, C, p, W)))
    out = out.at[:, :, p:H + p, :p].set(jnp.broadcast_to(left_pad, (b, C, H, p)))
    out = out.at[:, :, p:H + p, W + p:].set(jnp.broadcast_to(right_pad, (b, C, H, p)))
    B = b // P ** 2
    top = jnp.tile(jnp.arange(P), B) + jnp.repeat(jnp.arange(0, b, P ** 2), P)
    bot = jnp.tile(jnp.arange(P ** 2 - P, P ** 2), B) + jnp.repeat(
        jnp.arange(0, b, P ** 2), P)
    left = jnp.arange(0, b, P)
    right = jnp.arange(P - 1, b, P)
    out = out.at[top, :, :p, :].set(0.0)
    out = out.at[bot, :, H + p, :].set(0.0)
    out = out.at[left, :, :, :p].set(0.0)
    out = out.at[right, :, :, W + p:].set(0.0)
    return out


if __name__ == "__main__":
    padding = 1
    num_patches = 2              # P
    B = 2                        # images
    b = B * num_patches ** 2     # 8 patches total
    C, H, W = 4, 16, 16

    key = jax.random.PRNGKey(0)
    x = jax.random.normal(key, (b, C, H, W), dtype=jnp.float32)

    out = mean_2px_pad2d(x, padding, num_patches)
    out = jax.block_until_ready(out)

    ref = _reference(x, padding, num_patches)
    assert out.shape == (b, C, H + 2 * padding, W + 2 * padding)
    assert out.dtype == x.dtype
    assert jnp.allclose(out, ref, atol=1e-6), "mismatch vs reference"

    # TODO(synk): PaddingModule.get_error (training-time border MSE loss) is not
    # part of forward and is left to plain JAX gathers outside the kernel.
    print("KERNEL_OK")
</pallas_src>

<mosaic_0001>
module attributes {stable_mosaic.version = 11 : i64} {
  func.func @_mean2px_pad_kernel(%arg0: i32, %arg1: memref<4x4x16x16xf32, #tpu.memory_space<vmem>>, %arg2: memref<4x1x1x1xi32, #tpu.memory_space<vmem>>, %arg3: memref<4x4x18x18xf32, #tpu.memory_space<vmem>>) attributes {dimension_semantics = [#tpu.dimension_semantics<parallel>], iteration_bounds = array<i64: 2>, scalar_prefetch = 0 : i64, scratch_operands = 0 : i64, tpu.core_type = #tpu.core_type<tc>, window_params = [{transform_indices = @transform_0, window_bounds = array<i64: 4, 4, 16, 16>}, {transform_indices = @transform_1, window_bounds = array<i64: 4, 1, 1, 1>}, {transform_indices = @transform_2, window_bounds = array<i64: 4, 4, 18, 18>}]} {
    %c0 = arith.constant 0 : index
    %c0_0 = arith.constant 0 : index
    %c0_1 = arith.constant 0 : index
    %c0_2 = arith.constant 0 : index
    %0 = vector.load %arg1[%c0, %c0_0, %c0_1, %c0_2] : memref<4x4x16x16xf32, #tpu.memory_space<vmem>>, vector<4x4x16x16xf32>
    %1 = vector.extract_strided_slice %0 {offsets = [0, 0, 0, 0], sizes = [4, 4, 1, 16], strides = [1, 1, 1, 1]} : vector<4x4x16x16xf32> to vector<4x4x1x16xf32>
    %2 = vector.extract_strided_slice %0 {offsets = [0, 0, 1, 0], sizes = [4, 4, 1, 16], strides = [1, 1, 1, 1]} : vector<4x4x16x16xf32> to vector<4x4x1x16xf32>
    %3 = arith.addf %1, %2 : vector<4x4x1x16xf32>
    %cst = arith.constant 5.000000e-01 : f32
    %4 = vector.broadcast %cst : f32 to vector<4x4x1x16xf32>
    %5 = arith.mulf %3, %4 : vector<4x4x1x16xf32>
    %6 = vector.extract_strided_slice %0 {offsets = [0, 0, 14, 0], sizes = [4, 4, 1, 16], strides = [1, 1, 1, 1]} : vector<4x4x16x16xf32> to vector<4x4x1x16xf32>
    %7 = vector.extract_strided_slice %0 {offsets = [0, 0, 15, 0], sizes = [4, 4, 1, 16], strides = [1, 1, 1, 1]} : vector<4x4x16x16xf32> to vector<4x4x1x16xf32>
    %8 = arith.addf %6, %7 : vector<4x4x1x16xf32>
    %cst_3 = arith.constant 5.000000e-01 : f32
    %9 = vector.broadcast %cst_3 : f32 to vector<4x4x1x16xf32>
    %10 = arith.mulf %8, %9 : vector<4x4x1x16xf32>
    %11 = vector.extract_strided_slice %0 {offsets = [0, 0, 0, 0], sizes = [4, 4, 16, 1], strides = [1, 1, 1, 1]} : vector<4x4x16x16xf32> to vector<4x4x16x1xf32>
    %12 = vector.extract_strided_slice %0 {offsets = [0, 0, 0, 1], sizes = [4, 4, 16, 1], strides = [1, 1, 1, 1]} : vector<4x4x16x16xf32> to vector<4x4x16x1xf32>
    %13 = arith.addf %11, %12 : vector<4x4x16x1xf32>
    %cst_4 = arith.constant 5.000000e-01 : f32
    %14 = vector.broadcast %cst_4 : f32 to vector<4x4x16x1xf32>
    %15 = arith.mulf %13, %14 : vector<4x4x16x1xf32>
    %16 = vector.extract_strided_slice %0 {offsets = [0, 0, 0, 14], sizes = [4, 4, 16, 1], strides = [1, 1, 1, 1]} : vector<4x4x16x16xf32> to vector<4x4x16x1xf32>
    %17 = vector.extract_strided_slice %0 {offsets = [0, 0, 0, 15], sizes = [4, 4, 16, 1], strides = [1, 1, 1, 1]} : vector<4x4x16x16xf32> to vector<4x4x16x1xf32>
    %18 = arith.addf %16, %17 : vector<4x4x16x1xf32>
    %cst_5 = arith.constant 5.000000e-01 : f32
    %19 = vector.broadcast %cst_5 : f32 to vector<4x4x16x1xf32>
    %20 = arith.mulf %18, %19 : vector<4x4x16x1xf32>
    %21 = vector.extract_strided_slice %0 {offsets = [0, 0, 0, 0], sizes = [4, 4, 1, 1], strides = [1, 1, 1, 1]} : vector<4x4x16x16xf32> to vector<4x4x1x1xf32>
    %22 = vector.extract_strided_slice %0 {offsets = [0, 0, 0, 15], sizes = [4, 4, 1, 1], strides = [1, 1, 1, 1]} : vector<4x4x16x16xf32> to vector<4x4x1x1xf32>
    %23 = vector.extract_strided_slice %0 {offsets = [0, 0, 15, 0], sizes = [4, 4, 1, 1], strides = [1, 1, 1, 1]} : vector<4x4x16x16xf32> to vector<4x4x1x1xf32>
    %24 = vector.extract_strided_slice %0 {offsets = [0, 0, 15, 15], sizes = [4, 4, 1, 1], strides = [1, 1, 1, 1]} : vector<4x4x16x16xf32> to vector<4x4x1x1xf32>
    %25 = tpu.concatenate %15, %0, %20 in 3 : vector<4x4x16x1xf32>, vector<4x4x16x16xf32>, vector<4x4x16x1xf32> -> vector<4x4x16x18xf32>
    %26 = tpu.concatenate %21, %5, %22 in 3 : vector<4x4x1x1xf32>, vector<4x4x1x16xf32>, vector<4x4x1x1xf32> -> vector<4x4x1x18xf32>
    %27 = tpu.concatenate %23, %10, %24 in 3 : vector<4x4x1x1xf32>, vector<4x4x1x16xf32>, vector<4x4x1x1xf32> -> vector<4x4x1x18xf32>
    %28 = tpu.concatenate %26, %25, %27 in 2 : vector<4x4x1x18xf32>, vector<4x4x16x18xf32>, vector<4x4x1x18xf32> -> vector<4x4x18x18xf32>
    %c0_6 = arith.constant 0 : index
    %c0_7 = arith.constant 0 : index
    %c0_8 = arith.constant 0 : index
    %c0_9 = arith.constant 0 : index
    %29 = vector.load %arg2[%c0_6, %c0_7, %c0_8, %c0_9] : memref<4x1x1x1xi32, #tpu.memory_space<vmem>>, vector<4x1x1x1xi32>
    %c1_i32 = arith.constant 1 : i32
    %30 = vector.broadcast %c1_i32 : i32 to vector<4x1x1x1xi32>
    %31 = arith.andi %29, %30 : vector<4x1x1x1xi32>
    %c0_i32 = arith.constant 0 : i32
    %32 = vector.broadcast %c0_i32 : i32 to vector<4x1x1x1xi32>
    %33 = arith.cmpi sgt, %31, %32 : vector<4x1x1x1xi32>
    %c2_i32 = arith.constant 2 : i32
    %34 = vector.broadcast %c2_i32 : i32 to vector<4x1x1x1xi32>
    %35 = arith.andi %29, %34 : vector<4x1x1x1xi32>
    %c0_i32_10 = arith.constant 0 : i32
    %36 = vector.broadcast %c0_i32_10 : i32 to vector<4x1x1x1xi32>
    %37 = arith.cmpi sgt, %35, %36 : vector<4x1x1x1xi32>
    %c4_i32 = arith.constant 4 : i32
    %38 = vector.broadcast %c4_i32 : i32 to vector<4x1x1x1xi32>
    %39 = arith.andi %29, %38 : vector<4x1x1x1xi32>
    %c0_i32_11 = arith.constant 0 : i32
    %40 = vector.broadcast %c0_i32_11 : i32 to vector<4x1x1x1xi32>
    %41 = arith.cmpi sgt, %39, %40 : vector<4x1x1x1xi32>
    %c8_i32 = arith.constant 8 : i32
    %42 = vector.broadcast %c8_i32 : i32 to vector<4x1x1x1xi32>
    %43 = arith.andi %29, %42 : vector<4x1x1x1xi32>
    %c0_i32_12 = arith.constant 0 : i32
    %44 = vector.broadcast %c0_i32_12 : i32 to vector<4x1x1x1xi32>
    %45 = arith.cmpi sgt, %43, %44 : vector<4x1x1x1xi32>
    %46 = tpu.iota {dimensions = array<i32: 2>} : vector<1x1x18x18xi32>
    %47 = tpu.iota {dimensions = array<i32: 3>} : vector<1x1x18x18xi32>
    %c1_i32_13 = arith.constant 1 : i32
    %48 = vector.broadcast %c1_i32_13 : i32 to vector<1x1x18x18xi32>
    %49 = arith.cmpi slt, %46, %48 : vector<1x1x18x18xi32>
    %50 = vector.broadcast %33 : vector<4x1x1x1xi1> to vector<4x1x18x18xi1>
    %51 = vector.broadcast %49 : vector<1x1x18x18xi1> to vector<4x1x18x18xi1>
    %52 = arith.andi %50, %51 : vector<4x1x18x18xi1>
    %c17_i32 = arith.constant 17 : i32
    %53 = vector.broadcast %c17_i32 : i32 to vector<1x1x18x18xi32>
    %54 = arith.cmpi eq, %46, %53 : vector<1x1x18x18xi32>
    %55 = vector.broadcast %37 : vector<4x1x1x1xi1> to vector<4x1x18x18xi1>
    %56 = vector.broadcast %54 : vector<1x1x18x18xi1> to vector<4x1x18x18xi1>
    %57 = arith.andi %55, %56 : vector<4x1x18x18xi1>
    %58 = arith.ori %52, %57 : vector<4x1x18x18xi1>
    %c1_i32_14 = arith.constant 1 : i32
    %59 = vector.broadcast %c1_i32_14 : i32 to vector<1x1x18x18xi32>
    %60 = arith.cmpi slt, %47, %59 : vector<1x1x18x18xi32>
    %61 = vector.broadcast %41 : vector<4x1x1x1xi1> to vector<4x1x18x18xi1>
    %62 = vector.broadcast %60 : vector<1x1x18x18xi1> to vector<4x1x18x18xi1>
    %63 = arith.andi %61, %62 : vector<4x1x18x18xi1>
    %64 = arith.ori %58, %63 : vector<4x1x18x18xi1>
    %c17_i32_15 = arith.constant 17 : i32
    %65 = vector.broadcast %c17_i32_15 : i32 to vector<1x1x18x18xi32>
    %66 = arith.cmpi sge, %47, %65 : vector<1x1x18x18xi32>
    %67 = vector.broadcast %45 : vector<4x1x1x1xi1> to vector<4x1x18x18xi1>
    %68 = vector.broadcast %66 : vector<1x1x18x18xi1> to vector<4x1x18x18xi1>
    %69 = arith.andi %67, %68 : vector<4x1x18x18xi1>
    %70 = arith.ori %64, %69 : vector<4x1x18x18xi1>
    %71 = vector.shape_cast %70 : vector<4x1x18x18xi1> to vector<4x1x18x18xi1>
    %72 = vector.broadcast %71 : vector<4x1x18x18xi1> to vector<4x4x18x18xi1>
    %cst_16 = arith.constant 0.000000e+00 : f32
    %73 = vector.broadcast %cst_16 : f32 to vector<4x4x18x18xf32>
    %74 = arith.select %72, %73, %28 : vector<4x4x18x18xi1>, vector<4x4x18x18xf32>
    %c0_17 = arith.constant 0 : index
    %c0_18 = arith.constant 0 : index
    %c0_19 = arith.constant 0 : index
    %c0_20 = arith.constant 0 : index
    %75 = vector.load %arg3[%c0_17, %c0_18, %c0_19, %c0_20] : memref<4x4x18x18xf32, #tpu.memory_space<vmem>>, vector<4x4x18x18xf32>
    tpu.vector_store %arg3[%c0_17, %c0_18, %c0_19, %c0_20], %74 {strides = array<i32>} : memref<4x4x18x18xf32, #tpu.memory_space<vmem>>, vector<4x4x18x18xf32>,
    return
  }
  func.func @transform_0(%arg0: i32) -> (i32, i32, i32, i32) {
    %c0_i32 = arith.constant 0 : i32
    %c0_i32_0 = arith.constant 0 : i32
    %c0_i32_1 = arith.constant 0 : i32
    %c0_i32_2 = arith.constant 0 : i32
    return %arg0, %c0_i32, %c0_i32_0, %c0_i32_1 : i32, i32, i32, i32
  }
  func.func @transform_1(%arg0: i32) -> (i32, i32, i32, i32) {
    %c0_i32 = arith.constant 0 : i32
    %c0_i32_0 = arith.constant 0 : i32
    %c0_i32_1 = arith.constant 0 : i32
    %c0_i32_2 = arith.constant 0 : i32
    return %arg0, %c0_i32, %c0_i32_0, %c0_i32_1 : i32, i32, i32, i32
  }
  func.func @transform_2(%arg0: i32) -> (i32, i32, i32, i32) {
    %c0_i32 = arith.constant 0 : i32
    %c0_i32_0 = arith.constant 0 : i32
    %c0_i32_1 = arith.constant 0 : i32
    %c0_i32_2 = arith.constant 0 : i32
    return %arg0, %c0_i32, %c0_i32_0, %c0_i32_1 : i32, i32, i32, i32
  }
}

</mosaic_0001>

<llo_original>
// kernel: tpu_custom_call.1
$region0: #{tpu_custom_call.1}
  #allocation0 [shape = 'u32[]', space=smem, size = 0x4, offset = 0x4, fixed_abs, tag = 'smem constant byte address 0x4 - core index']
  #allocation1 [shape = 'u32[144,128]{1,0:T(1,128)}', space=vmem, size = 0x12000, scoped, tag = 'internal scratch']
  %s0 = inlined_call_operand.hbm [shape: f32[8,4,16,16], index: 0, kind: input, shape index: {}]
  %s1 = inlined_call_operand.vmem [shape: s32[8,1,1,1], index: 1, kind: input, shape index: {}]
  %s2 = inlined_call_operand.vmem [shape: f32[8,4,18,18], index: 2, kind: output, shape index: {}]
  %s3 = sld [smem:[#allocation0]]
  $region45: #{tpu_custom_call.1} parent=0
    _
  %s5 = ssub.s32 1, %s3
  %s6 = scalar_select 0, %s5, %s3
  $region1: #{tpu_custom_call.1} parent=0
    #allocation2 [shape = 'u8[262144]{0}', space=vmem, size = 0x40000, scoped, tag = 'input window, operand 0']
    #allocation3 [shape = 's32[2]{0}', space=sflag, size = 0x8, scoped, tag = 'scoped memory for tpu_custom_call.1']
    %7 = vsyncpa [#allocation3], 0
    %s8 = scalar_lea.sflag [#allocation3], 1
    %9 = vsyncpa %s8, 0
    loop: start=0, step=1, limit=4
    $region2: #{tpu_custom_call.1} parent=1 // loop_pre_header
      _
    $region3: #{tpu_custom_call.1} parent=1 // loop_header
      %s11 = sphi 0, %s15
      %p12 = scmp.ge.s32.totalorder %s11, 4
      %s21 = sphi 0, %s23
      %s24 = sphi 0, %s21
      %s25 = sphi 0, %s24
      %s41 = sphi 0, %s25
      %s47 = sphi 0, %s49
      %s50 = sphi 0, %s47
      %s51 = sphi 0, %s50
      %s67 = sphi 0, %s51
      %s73 = sphi 0, %s75
      %s76 = sphi 0, %s73
      %s77 = sphi 0, %s76
      %s93 = sphi 0, %s77
    $region4: #{tpu_custom_call.1} parent=1 // loop_header_branch
      %14 = sbr.rel (%p12) target = $region8
    $region5: #{tpu_custom_call.1} parent=1 // loop_body
      %s16 = ssub.s32 %s11, 1
      %s17 = ssub.s32 %s11, 2
      %s18 = sadd.s32 %s11, 1
      %s19 = ssub.s32 %s11, %s18
      %p20 = scmp.eq.s32.totalorder %s19, 0
      %s22 = sadd.s32 %s21, 1
      %s23 = scalar_select %p20, %s21, %s22
      %p26 = pneg %p20
      %p27 = scmp.eq.s32.totalorder %s11, 1
      %p28 = por %p26, %p27
      %p29 = scmp.ne.s32.totalorder %s21, %s24
      %p30 = scmp.eq.s32.totalorder %s11, 0
      %p31 = por %p29, %p30
      %p32 = scmp.ne.s32.totalorder %s21, %s24
      %p33 = scmp.eq.s32.totalorder %s16, 1
      %p34 = por %p32, %p33
      %p35 = scmp.ne.s32.totalorder %s24, %s25
      %p36 = scmp.eq.s32.totalorder %s16, 0
      %p37 = por %p35, %p36
      %p38 = scmp.ne.s32.totalorder %s24, %s25
      %p39 = scmp.eq.s32.totalorder %s17, 1
      %p40 = por %p38, %p39
      %p42 = scmp.ne.s32.totalorder %s25, %s41
      %p43 = scmp.eq.s32.totalorder %s17, 0
      %p44 = por %p42, %p43
      %s45 = ssub.s32 %s11, %s18
      %p46 = scmp.eq.s32.totalorder %s45, 0
      %s48 = sadd.s32 %s47, 1
      %s49 = scalar_select %p46, %s47, %s48
      %p52 = pneg %p46
      %p53 = scmp.eq.s32.totalorder %s11, 1
      %p54 = por %p52, %p53
      %p55 = scmp.ne.s32.totalorder %s47, %s50
      %p56 = scmp.eq.s32.totalorder %s11, 0
      %p57 = por %p55, %p56
      %p58 = scmp.ne.s32.totalorder %s47, %s50
      %p59 = scmp.eq.s32.totalorder %s16, 1
      %p60 = por %p58, %p59
      %p61 = scmp.ne.s32.totalorder %s50, %s51
      %p62 = scmp.eq.s32.totalorder %s16, 0
      %p63 = por %p61, %p62
      %p64 = scmp.ne.s32.totalorder %s50, %s51
      %p65 = scmp.eq.s32.totalorder %s17, 1
      %p66 = por %p64, %p65
      %p68 = scmp.ne.s32.totalorder %s51, %s67
      %p69 = scmp.eq.s32.totalorder %s17, 0
      %p70 = por %p68, %p69
      %s71 = ssub.s32 %s11, %s18
      %p72 = scmp.eq.s32.totalorder %s71, 0
      %s74 = sadd.s32 %s73, 1
      %s75 = scalar_select %p72, %s73, %s74
      %p78 = pneg %p72
      %p79 = scmp.eq.s32.totalorder %s11, 1
      %p80 = por %p78, %p79
      %p81 = scmp.ne.s32.totalorder %s73, %s76
      %p82 = scmp.eq.s32.totalorder %s11, 0
      %p83 = por %p81, %p82
      %p84 = scmp.ne.s32.totalorder %s73, %s76
      %p85 = scmp.eq.s32.totalorder %s16, 1
      %p86 = por %p84, %p85
      %p87 = scmp.ne.s32.totalorder %s76, %s77
      %p88 = scmp.eq.s32.totalorder %s16, 0
      %p89 = por %p87, %p88
      %p90 = scmp.ne.s32.totalorder %s76, %s77
      %p91 = scmp.eq.s32.totalorder %s17, 1
      %p92 = por %p90, %p91
      %p94 = scmp.ne.s32.totalorder %s77, %s93
      %p95 = scmp.eq.s32.totalorder %s17, 0
      %p96 = por %p94, %p95
      %p97 = scmp.le.s32.totalorder 1, %s11
      %p98 = scmp.lt.s32.totalorder %s11, 3
      %p99 = pnand %p97, %p98
      %p100 = pneg %p99
      // Predicated region
      $region9: #{tpu_custom_call.1} parent=5 // pred_check
        _
      $region10: #{tpu_custom_call.1} parent=5 // pred_check_branch
        %102 = sbr.rel (%p99) target = $region12
      $region11: #{tpu_custom_call.1} parent=5 // pred_region
        %s103 = ssub.s32 %s11, 1
      $region12: #{tpu_custom_call.1} parent=5 // pred_fallthru
        _
      %p104 = scmp.lt.s32.totalorder %s11, 2
      // Predicated region
      $region13: #{tpu_custom_call.1} parent=5 // pred_check
        %p105 = pneg %p104
      $region14: #{tpu_custom_call.1} parent=5 // pred_check_branch
        %107 = sbr.rel (%p105) target = $region16
      $region15: #{tpu_custom_call.1} parent=5 // pred_region
        // Predicated region
        $region17: #{tpu_custom_call.1} parent=15 // pred_check
          %p108 = pneg %p31
        $region18: #{tpu_custom_call.1} parent=15 // pred_check_branch
          %110 = sbr.rel (%p108) target = $region20
        $region19: #{tpu_custom_call.1} parent=15 // pred_region
          %s111 = sand.u32 %s21, 1
          %s112 = scalar_lea.sflag [#allocation3], %s111
          %s113 = sand.u32 %s21, 1
          %s114 = smul.addr %s113, 256
          %s115 = scalar_lea.vmem [#allocation2], %s114
          %s116 = smul.u32 4, %s11
          %s118 = ssub.s32 4096, 4096
          %119 = vsyncadd %s112, %s118
          %s120 = smul.addr %s116, 8
          %s121 = smul.addr %s120, 128
          %s122 = scalar_lea.hbm %s0, %s121
          %s123 = sshll.u32 %s115, 4
          %s124 = int_to_ptr.vmem [resolvable:$true] %s123
          %129 = dma.hbm_to_vmem [thread:$0]  %s122, 4096, %s124, %s112, 128, 128, 8
        $region20: #{tpu_custom_call.1} parent=15 // pred_fallthru
          _
        // Predicated region
        $region21: #{tpu_custom_call.1} parent=15 // pred_check
          %p130 = pneg %p57
        $region22: #{tpu_custom_call.1} parent=15 // pred_check_branch
          %132 = sbr.rel (%p130) target = $region24
        $region23: #{tpu_custom_call.1} parent=15 // pred_region
          %s133 = smul.u32 4, %s11
          %p134 = scmp.lt.s32.totalorder %s133, 7
          %s135 = scalar_select %p134, %s133, 7
          %s136 = scalar_lea.vmem %s1, %s135
          %s137 = smul.u32 4, %s11
        $region24: #{tpu_custom_call.1} parent=15 // pred_fallthru
          _
      $region16: #{tpu_custom_call.1} parent=5 // pred_fallthru
        _
      %p138 = scmp.le.s32.totalorder 1, %s11
      %p139 = scmp.lt.s32.totalorder %s11, 3
      %p140 = pnand %p138, %p139
      %p141 = pneg %p140
      // Predicated region
      $region25: #{tpu_custom_call.1} parent=5 // pred_check
        _
      $region26: #{tpu_custom_call.1} parent=5 // pred_check_branch
        %143 = sbr.rel (%p140) target = $region28
      $region27: #{tpu_custom_call.1} parent=5 // pred_region
        %s144 = ssub.s32 %s11, 1
        %s145 = sand.u32 %s24, 1
        %s146 = scalar_lea.sflag [#allocation3], %s145
        %s147 = sand.u32 %s24, 1
        %s148 = smul.addr %s147, 256
        %s149 = scalar_lea.vmem [#allocation2], %s148
        // Predicated region
        $region29: #{tpu_custom_call.1} parent=27 // pred_check
          %p150 = pneg %p37
        $region30: #{tpu_custom_call.1} parent=27 // pred_check_branch
          %152 = sbr.rel (%p150) target = $region32
        $region31: #{tpu_custom_call.1} parent=27 // pred_region
          %153 = dma.done %s146, 4096
        $region32: #{tpu_custom_call.1} parent=27 // pred_fallthru
          _
        %s154 = sand.u32 %s24, 1
        %s155 = scalar_lea.sflag [#allocation3], %s154
        %s156 = sand.u32 %s24, 1
        %s157 = smul.addr %s156, 256
        %s158 = scalar_lea.vmem [#allocation2], %s157
        %p159 = pneg %p37
        %p160 = pneg %p34
        %s161 = smul.u32 4, %s16
        %p162 = scmp.lt.s32.totalorder %s161, 7
        %s163 = scalar_select %p162, %s161, 7
        %s164 = scalar_lea.vmem %s1, %s163
        %p165 = pneg %p63
        %p166 = pneg %p60
        %p167 = pneg %p89
        %p168 = pneg %p86
        %s169 = smul.u32 4, %s16
        %p170 = scmp.lt.s32.totalorder %s169, 7
        %s171 = scalar_select %p170, %s169, 7
        %s172 = smul.addr %s171, 12
        %s173 = smul.addr %s172, 8
        %s174 = scalar_lea.vmem %s2, %s173
        %s175 = smul.u32 4, %s16
        %s176 = smul.u32 4, %s16
        %p177 = scmp.lt.s32.totalorder %s176, 7
        %s178 = scalar_select %p177, %s176, 7
        %s179 = scalar_lea.vmem %s1, %s178
        %s180 = smul.u32 4, %s16
        %s181 = smul.u32 4, %s16
        %p182 = scmp.lt.s32.totalorder %s181, 7
        %s183 = scalar_select %p182, %s181, 7
        %s184 = smul.addr %s183, 12
        %s185 = smul.addr %s184, 8
        %s186 = scalar_lea.vmem %s2, %s185
        %s187 = smul.u32 4, %s16
        %v188 = vld [vmem:[%s149] sm:$0xff]
        %v189 = vld [vmem:[%s149 + $0x8] sm:$0xff]
        %v190 = vld [vmem:[%s149 + $0x10] sm:$0xff]
        %v191 = vld [vmem:[%s149 + $0x18] sm:$0xff]
        %v192 = vld [vmem:[%s149 + $0x20] sm:$0xff]
        %v193 = vld [vmem:[%s149 + $0x28] sm:$0xff]
        %v194 = vld [vmem:[%s149 + $0x30] sm:$0xff]
        %v195 = vld [vmem:[%s149 + $0x38] sm:$0xff]
        %v196 = vld [vmem:[%s149 + $0x40] sm:$0xff]
        %v197 = vld [vmem:[%s149 + $0x48] sm:$0xff]
        %v198 = vld [vmem:[%s149 + $0x50] sm:$0xff]
        %v199 = vld [vmem:[%s149 + $0x58] sm:$0xff]
        %v200 = vld [vmem:[%s149 + $0x60] sm:$0xff]
        %v201 = vld [vmem:[%s149 + $0x68] sm:$0xff]
        %v202 = vld [vmem:[%s149 + $0x70] sm:$0xff]
        %v203 = vld [vmem:[%s149 + $0x78] sm:$0xff]
        %v204 = vld [vmem:[%s149 + $0x80] sm:$0xff]
        %v205 = vld [vmem:[%s149 + $0x88] sm:$0xff]
        %v206 = vld [vmem:[%s149 + $0x90] sm:$0xff]
        %v207 = vld [vmem:[%s149 + $0x98] sm:$0xff]
        %v208 = vld [vmem:[%s149 + $0xa0] sm:$0xff]
        %v209 = vld [vmem:[%s149 + $0xa8] sm:$0xff]
        %v210 = vld [vmem:[%s149 + $0xb0] sm:$0xff]
        %v211 = vld [vmem:[%s149 + $0xb8] sm:$0xff]
        %v212 = vld [vmem:[%s149 + $0xc0] sm:$0xff]
        %v213 = vld [vmem:[%s149 + $0xc8] sm:$0xff]
        %v214 = vld [vmem:[%s149 + $0xd0] sm:$0xff]
        %v215 = vld [vmem:[%s149 + $0xd8] sm:$0xff]
        %v216 = vld [vmem:[%s149 + $0xe0] sm:$0xff]
        %v217 = vld [vmem:[%s149 + $0xe8] sm:$0xff]
        %v218 = vld [vmem:[%s149 + $0xf0] sm:$0xff]
        %v219 = vld [vmem:[%s149 + $0xf8] sm:$0xff]
        %v236 = vrot.slane %v188, 1
        %v237 = vrot.slane %v190, 1
        %v238 = vrot.slane %v192, 1
        %v239 = vrot.slane %v194, 1
        %v240 = vrot.slane %v196, 1
        %v241 = vrot.slane %v198, 1
        %v242 = vrot.slane %v200, 1
        %v243 = vrot.slane %v202, 1
        %v244 = vrot.slane %v204, 1
        %v245 = vrot.slane %v206, 1
        %v246 = vrot.slane %v208, 1
        %v247 = vrot.slane %v210, 1
        %v248 = vrot.slane %v212, 1
        %v249 = vrot.slane %v214, 1
        %v250 = vrot.slane %v216, 1
        %v251 = vrot.slane %v218, 1
        %v268 = vadd.f32 %v188, %v236
        %v269 = vadd.f32 %v190, %v237
        %v270 = vadd.f32 %v192, %v238
        %v271 = vadd.f32 %v194, %v239
        %v272 = vadd.f32 %v196, %v240
        %v273 = vadd.f32 %v198, %v241
        %v274 = vadd.f32 %v200, %v242
        %v275 = vadd.f32 %v202, %v243
        %v276 = vadd.f32 %v204, %v244
        %v277 = vadd.f32 %v206, %v245
        %v278 = vadd.f32 %v208, %v246
        %v279 = vadd.f32 %v210, %v247
        %v280 = vadd.f32 %v212, %v248
        %v281 = vadd.f32 %v214, %v249
        %v282 = vadd.f32 %v216, %v250
        %v283 = vadd.f32 %v218, %v251
        %v284 = vmul.f32 %v268, 0.5
        %v285 = vmul.f32 %v269, 0.5
        %v286 = vmul.f32 %v270, 0.5
        %v287 = vmul.f32 %v271, 0.5
        %v288 = vmul.f32 %v272, 0.5
        %v289 = vmul.f32 %v273, 0.5
        %v290 = vmul.f32 %v274, 0.5
        %v291 = vmul.f32 %v275, 0.5
        %v292 = vmul.f32 %v276, 0.5
        %v293 = vmul.f32 %v277, 0.5
        %v294 = vmul.f32 %v278, 0.5
        %v295 = vmul.f32 %v279, 0.5
        %v296 = vmul.f32 %v280, 0.5
        %v297 = vmul.f32 %v281, 0.5
        %v298 = vmul.f32 %v282, 0.5
        %v299 = vmul.f32 %v283, 0.5
        %v316 = vrot.slane %v189, 1
        %v317 = vrot.slane %v191, 1
        %v318 = vrot.slane %v193, 1
        %v319 = vrot.slane %v195, 1
        %v320 = vrot.slane %v197, 1
        %v321 = vrot.slane %v199, 1
        %v322 = vrot.slane %v201, 1
        %v323 = vrot.slane %v203, 1
        %v324 = vrot.slane %v205, 1
        %v325 = vrot.slane %v207, 1
        %v326 = vrot.slane %v209, 1
        %v327 = vrot.slane %v211, 1
        %v328 = vrot.slane %v213, 1
        %v329 = vrot.slane %v215, 1
        %v330 = vrot.slane %v217, 1
        %v331 = vrot.slane %v219, 1
        %v348 = vadd.f32 %v189, %v316
        %v349 = vadd.f32 %v191, %v317
        %v350 = vadd.f32 %v193, %v318
        %v351 = vadd.f32 %v195, %v319
        %v352 = vadd.f32 %v197, %v320
        %v353 = vadd.f32 %v199, %v321
        %v354 = vadd.f32 %v201, %v322
        %v355 = vadd.f32 %v203, %v323
        %v356 = vadd.f32 %v205, %v324
        %v357 = vadd.f32 %v207, %v325
        %v358 = vadd.f32 %v209, %v326
        %v359 = vadd.f32 %v211, %v327
        %v360 = vadd.f32 %v213, %v328
        %v361 = vadd.f32 %v215, %v329
        %v362 = vadd.f32 %v217, %v330
        %v363 = vadd.f32 %v219, %v331
        %v364 = vmul.f32 %v348, 0.5
        %v365 = vmul.f32 %v349, 0.5
        %v366 = vmul.f32 %v350, 0.5
        %v367 = vmul.f32 %v351, 0.5
        %v368 = vmul.f32 %v352, 0.5
        %v369 = vmul.f32 %v353, 0.5
        %v370 = vmul.f32 %v354, 0.5
        %v371 = vmul.f32 %v355, 0.5
        %v372 = vmul.f32 %v356, 0.5
        %v373 = vmul.f32 %v357, 0.5
        %v374 = vmul.f32 %v358, 0.5
        %v375 = vmul.f32 %v359, 0.5
        %v376 = vmul.f32 %v360, 0.5
        %v377 = vmul.f32 %v361, 0.5
        %v378 = vmul.f32 %v362, 0.5
        %v379 = vmul.f32 %v363, 0.5
        %380 = vrot.lane.b32.xlu0 %v188, 127
        %v381 = vpop.permute.xlu0 %380
        %382 = vrot.lane.b32.xlu0 %v189, 127
        %v383 = vpop.permute.xlu0 %382
        %384 = vrot.lane.b32.xlu0 %v190, 127
        %v385 = vpop.permute.xlu0 %384
        %386 = vrot.lane.b32.xlu0 %v191, 127
        %v387 = vpop.permute.xlu0 %386
        %388 = vrot.lane.b32.xlu0 %v192, 127
        %v389 = vpop.permute.xlu0 %388
        %390 = vrot.lane.b32.xlu0 %v193, 127
        %v391 = vpop.permute.xlu0 %390
        %392 = vrot.lane.b32.xlu0 %v194, 127
        %v393 = vpop.permute.xlu0 %392
        %394 = vrot.lane.b32.xlu0 %v195, 127
        %v395 = vpop.permute.xlu0 %394
        %396 = vrot.lane.b32.xlu0 %v196, 127
        %v397 = vpop.permute.xlu0 %396
        %398 = vrot.lane.b32.xlu0 %v197, 127
        %v399 = vpop.permute.xlu0 %398
        %400 = vrot.lane.b32.xlu0 %v198, 127
        %v401 = vpop.permute.xlu0 %400
        %402 = vrot.lane.b32.xlu0 %v199, 127
        %v403 = vpop.permute.xlu0 %402
        %404 = vrot.lane.b32.xlu0 %v200, 127
        %v405 = vpop.permute.xlu0 %404
        %406 = vrot.lane.b32.xlu0 %v201, 127
        %v407 = vpop.permute.xlu0 %406
        %408 = vrot.lane.b32.xlu0 %v202, 127
        %v409 = vpop.permute.xlu0 %408
        %410 = vrot.lane.b32.xlu0 %v203, 127
        %v411 = vpop.permute.xlu0 %410
        %412 = vrot.lane.b32.xlu0 %v204, 127
        %v413 = vpop.permute.xlu0 %412
        %414 = vrot.lane.b32.xlu0 %v205, 127
        %v415 = vpop.permute.xlu0 %414
        %416 = vrot.lane.b32.xlu0 %v206, 127
        %v417 = vpop.permute.xlu0 %416
        %418 = vrot.lane.b32.xlu0 %v207, 127
        %v419 = vpop.permute.xlu0 %418
        %420 = vrot.lane.b32.xlu0 %v208, 127
        %v421 = vpop.permute.xlu0 %420
        %422 = vrot.lane.b32.xlu0 %v209, 127
        %v423 = vpop.permute.xlu0 %422
        %424 = vrot.lane.b32.xlu0 %v210, 127
        %v425 = vpop.permute.xlu0 %424
        %426 = vrot.lane.b32.xlu0 %v211, 127
        %v427 = vpop.permute.xlu0 %426
        %428 = vrot.lane.b32.xlu0 %v212, 127
        %v429 = vpop.permute.xlu0 %428
        %430 = vrot.lane.b32.xlu0 %v213, 127
        %v431 = vpop.permute.xlu0 %430
        %432 = vrot.lane.b32.xlu0 %v214, 127
        %v433 = vpop.permute.xlu0 %432
        %434 = vrot.lane.b32.xlu0 %v215, 127
        %v435 = vpop.permute.xlu0 %434
        %436 = vrot.lane.b32.xlu0 %v216, 127
        %v437 = vpop.permute.xlu0 %436
        %438 = vrot.lane.b32.xlu0 %v217, 127
        %v439 = vpop.permute.xlu0 %438
        %440 = vrot.lane.b32.xlu0 %v218, 127
        %v441 = vpop.permute.xlu0 %440
        %442 = vrot.lane.b32.xlu0 %v219, 127
        %v443 = vpop.permute.xlu0 %442
        %v476 = vadd.f32 %v188, %v381
        %v477 = vadd.f32 %v189, %v383
        %v478 = vadd.f32 %v190, %v385
        %v479 = vadd.f32 %v191, %v387
        %v480 = vadd.f32 %v192, %v389
        %v481 = vadd.f32 %v193, %v391
        %v482 = vadd.f32 %v194, %v393
        %v483 = vadd.f32 %v195, %v395
        %v484 = vadd.f32 %v196, %v397
        %v485 = vadd.f32 %v197, %v399
        %v486 = vadd.f32 %v198, %v401
        %v487 = vadd.f32 %v199, %v403
        %v488 = vadd.f32 %v200, %v405
        %v489 = vadd.f32 %v201, %v407
        %v490 = vadd.f32 %v202, %v409
        %v491 = vadd.f32 %v203, %v411
        %v492 = vadd.f32 %v204, %v413
        %v493 = vadd.f32 %v205, %v415
        %v494 = vadd.f32 %v206, %v417
        %v495 = vadd.f32 %v207, %v419
        %v496 = vadd.f32 %v208, %v421
        %v497 = vadd.f32 %v209, %v423
        %v498 = vadd.f32 %v210, %v425
        %v499 = vadd.f32 %v211, %v427
        %v500 = vadd.f32 %v212, %v429
        %v501 = vadd.f32 %v213, %v431
        %v502 = vadd.f32 %v214, %v433
        %v503 = vadd.f32 %v215, %v435
        %v504 = vadd.f32 %v216, %v437
        %v505 = vadd.f32 %v217, %v439
        %v506 = vadd.f32 %v218, %v441
        %v507 = vadd.f32 %v219, %v443
        %v508 = vmul.f32 %v476, 0.5
        %v509 = vmul.f32 %v477, 0.5
        %v510 = vmul.f32 %v478, 0.5
        %v511 = vmul.f32 %v479, 0.5
        %v512 = vmul.f32 %v480, 0.5
        %v513 = vmul.f32 %v481, 0.5
        %v514 = vmul.f32 %v482, 0.5
        %v515 = vmul.f32 %v483, 0.5
        %v516 = vmul.f32 %v484, 0.5
        %v517 = vmul.f32 %v485, 0.5
        %v518 = vmul.f32 %v486, 0.5
        %v519 = vmul.f32 %v487, 0.5
        %v520 = vmul.f32 %v488, 0.5
        %v521 = vmul.f32 %v489, 0.5
        %v522 = vmul.f32 %v490, 0.5
        %v523 = vmul.f32 %v491, 0.5
        %v524 = vmul.f32 %v492, 0.5
        %v525 = vmul.f32 %v493, 0.5
        %v526 = vmul.f32 %v494, 0.5
        %v527 = vmul.f32 %v495, 0.5
        %v528 = vmul.f32 %v496, 0.5
        %v529 = vmul.f32 %v497, 0.5
        %v530 = vmul.f32 %v498, 0.5
        %v531 = vmul.f32 %v499, 0.5
        %v532 = vmul.f32 %v500, 0.5
        %v533 = vmul.f32 %v501, 0.5
        %v534 = vmul.f32 %v502, 0.5
        %v535 = vmul.f32 %v503, 0.5
        %v536 = vmul.f32 %v504, 0.5
        %v537 = vmul.f32 %v505, 0.5
        %v538 = vmul.f32 %v506, 0.5
        %v539 = vmul.f32 %v507, 0.5
        %540 = vrot.lane.b32.xlu0 %v188, 1
        %v541 = vpop.permute.xlu0 %540
        %542 = vrot.lane.b32.xlu0 %v189, 1
        %v543 = vpop.permute.xlu0 %542
        %544 = vrot.lane.b32.xlu0 %v190, 1
        %v545 = vpop.permute.xlu0 %544
        %546 = vrot.lane.b32.xlu0 %v191, 1
        %v547 = vpop.permute.xlu0 %546
        %548 = vrot.lane.b32.xlu0 %v192, 1
        %v549 = vpop.permute.xlu0 %548
        %550 = vrot.lane.b32.xlu0 %v193, 1
        %v551 = vpop.permute.xlu0 %550
        %552 = vrot.lane.b32.xlu0 %v194, 1
        %v553 = vpop.permute.xlu0 %552
        %554 = vrot.lane.b32.xlu0 %v195, 1
        %v555 = vpop.permute.xlu0 %554
        %556 = vrot.lane.b32.xlu0 %v196, 1
        %v557 = vpop.permute.xlu0 %556
        %558 = vrot.lane.b32.xlu0 %v197, 1
        %v559 = vpop.permute.xlu0 %558
        %560 = vrot.lane.b32.xlu0 %v198, 1
        %v561 = vpop.permute.xlu0 %560
        %562 = vrot.lane.b32.xlu0 %v199, 1
        %v563 = vpop.permute.xlu0 %562
        %564 = vrot.lane.b32.xlu0 %v200, 1
        %v565 = vpop.permute.xlu0 %564
        %566 = vrot.lane.b32.xlu0 %v201, 1
        %v567 = vpop.permute.xlu0 %566
        %568 = vrot.lane.b32.xlu0 %v202, 1
        %v569 = vpop.permute.xlu0 %568
        %570 = vrot.lane.b32.xlu0 %v203, 1
        %v571 = vpop.permute.xlu0 %570
        %572 = vrot.lane.b32.xlu0 %v204, 1
        %v573 = vpop.permute.xlu0 %572
        %574 = vrot.lane.b32.xlu0 %v205, 1
        %v575 = vpop.permute.xlu0 %574
        %576 = vrot.lane.b32.xlu0 %v206, 1
        %v577 = vpop.permute.xlu0 %576
        %578 = vrot.lane.b32.xlu0 %v207, 1
        %v579 = vpop.permute.xlu0 %578
        %580 = vrot.lane.b32.xlu0 %v208, 1
        %v581 = vpop.permute.xlu0 %580
        %582 = vrot.lane.b32.xlu0 %v209, 1
        %v583 = vpop.permute.xlu0 %582
        %584 = vrot.lane.b32.xlu0 %v210, 1
        %v585 = vpop.permute.xlu0 %584
        %586 = vrot.lane.b32.xlu0 %v211, 1
        %v587 = vpop.permute.xlu0 %586
        %588 = vrot.lane.b32.xlu0 %v212, 1
        %v589 = vpop.permute.xlu0 %588
        %590 = vrot.lane.b32.xlu0 %v213, 1
        %v591 = vpop.permute.xlu0 %590
        %592 = vrot.lane.b32.xlu0 %v214, 1
        %v593 = vpop.permute.xlu0 %592
        %594 = vrot.lane.b32.xlu0 %v215, 1
        %v595 = vpop.permute.xlu0 %594
        %596 = vrot.lane.b32.xlu0 %v216, 1
        %v597 = vpop.permute.xlu0 %596
        %598 = vrot.lane.b32.xlu0 %v217, 1
        %v599 = vpop.permute.xlu0 %598
        %600 = vrot.lane.b32.xlu0 %v218, 1
        %v601 = vpop.permute.xlu0 %600
        %602 = vrot.lane.b32.xlu0 %v219, 1
        %v603 = vpop.permute.xlu0 %602
        %668 = vrot.lane.b32.xlu0 %v508, 3
        %v669 = vpop.permute.xlu0 %668
        %670 = vrot.lane.b32.xlu0 %v509, 3
        %v671 = vpop.permute.xlu0 %670
        %672 = vrot.lane.b32.xlu0 %v510, 3
        %v673 = vpop.permute.xlu0 %672
        %674 = vrot.lane.b32.xlu0 %v511, 3
        %v675 = vpop.permute.xlu0 %674
        %676 = vrot.lane.b32.xlu0 %v512, 3
        %v677 = vpop.permute.xlu0 %676
        %678 = vrot.lane.b32.xlu0 %v513, 3
        %v679 = vpop.permute.xlu0 %678
        %680 = vrot.lane.b32.xlu0 %v514, 3
        %v681 = vpop.permute.xlu0 %680
        %682 = vrot.lane.b32.xlu0 %v515, 3
        %v683 = vpop.permute.xlu0 %682
        %684 = vrot.lane.b32.xlu0 %v516, 3
        %v685 = vpop.permute.xlu0 %684
        %686 = vrot.lane.b32.xlu0 %v517, 3
        %v687 = vpop.permute.xlu0 %686
        %688 = vrot.lane.b32.xlu0 %v518, 3
        %v689 = vpop.permute.xlu0 %688
        %690 = vrot.lane.b32.xlu0 %v519, 3
        %v691 = vpop.permute.xlu0 %690
        %692 = vrot.lane.b32.xlu0 %v520, 3
        %v693 = vpop.permute.xlu0 %692
        %694 = vrot.lane.b32.xlu0 %v521, 3
        %v695 = vpop.permute.xlu0 %694
        %696 = vrot.lane.b32.xlu0 %v522, 3
        %v697 = vpop.permute.xlu0 %696
        %698 = vrot.lane.b32.xlu0 %v523, 3
        %v699 = vpop.permute.xlu0 %698
        %700 = vrot.lane.b32.xlu0 %v524, 3
        %v701 = vpop.permute.xlu0 %700
        %702 = vrot.lane.b32.xlu0 %v525, 3
        %v703 = vpop.permute.xlu0 %702
        %704 = vrot.lane.b32.xlu0 %v526, 3
        %v705 = vpop.permute.xlu0 %704
        %706 = vrot.lane.b32.xlu0 %v527, 3
        %v707 = vpop.permute.xlu0 %706
        %708 = vrot.lane.b32.xlu0 %v528, 3
        %v709 = vpop.permute.xlu0 %708
        %710 = vrot.lane.b32.xlu0 %v529, 3
        %v711 = vpop.permute.xlu0 %710
        %712 = vrot.lane.b32.xlu0 %v530, 3
        %v713 = vpop.permute.xlu0 %712
        %714 = vrot.lane.b32.xlu0 %v531, 3
        %v715 = vpop.permute.xlu0 %714
        %716 = vrot.lane.b32.xlu0 %v532, 3
        %v717 = vpop.permute.xlu0 %716
        %718 = vrot.lane.b32.xlu0 %v533, 3
        %v719 = vpop.permute.xlu0 %718
        %720 = vrot.lane.b32.xlu0 %v534, 3
        %v721 = vpop.permute.xlu0 %720
        %722 = vrot.lane.b32.xlu0 %v535, 3
        %v723 = vpop.permute.xlu0 %722
        %724 = vrot.lane.b32.xlu0 %v536, 3
        %v725 = vpop.permute.xlu0 %724
        %726 = vrot.lane.b32.xlu0 %v537, 3
        %v727 = vpop.permute.xlu0 %726
        %728 = vrot.lane.b32.xlu0 %v538, 3
        %v729 = vpop.permute.xlu0 %728
        %730 = vrot.lane.b32.xlu0 %v539, 3
        %v731 = vpop.permute.xlu0 %730
        %vm764 = vcmask 7168
        %v765 = vsel %vm764, %v508, %v541
        %v766 = vsel %vm764, %v509, %v543
        %v767 = vsel %vm764, %v510, %v545
        %v768 = vsel %vm764, %v511, %v547
        %v769 = vsel %vm764, %v512, %v549
        %v770 = vsel %vm764, %v513, %v551
        %v771 = vsel %vm764, %v514, %v553
        %v772 = vsel %vm764, %v515, %v555
        %v773 = vsel %vm764, %v516, %v557
        %v774 = vsel %vm764, %v517, %v559
        %v775 = vsel %vm764, %v518, %v561
        %v776 = vsel %vm764, %v519, %v563
        %v777 = vsel %vm764, %v520, %v565
        %v778 = vsel %vm764, %v521, %v567
        %v779 = vsel %vm764, %v522, %v569
        %v780 = vsel %vm764, %v523, %v571
        %v781 = vsel %vm764, %v524, %v573
        %v782 = vsel %vm764, %v525, %v575
        %v783 = vsel %vm764, %v526, %v577
        %v784 = vsel %vm764, %v527, %v579
        %v785 = vsel %vm764, %v528, %v581
        %v786 = vsel %vm764, %v529, %v583
        %v787 = vsel %vm764, %v530, %v585
        %v788 = vsel %vm764, %v531, %v587
        %v789 = vsel %vm764, %v532, %v589
        %v790 = vsel %vm764, %v533, %v591
        %v791 = vsel %vm764, %v534, %v593
        %v792 = vsel %vm764, %v535, %v595
        %v793 = vsel %vm764, %v536, %v597
        %v794 = vsel %vm764, %v537, %v599
        %v795 = vsel %vm764, %v538, %v601
        %v796 = vsel %vm764, %v539, %v603
        %vm797 = vcmask 138240
        %v798 = vsel %vm797, %v765, %v669
        %v799 = vsel %vm797, %v766, %v671
        %v800 = vsel %vm797, %v767, %v673
        %v801 = vsel %vm797, %v768, %v675
        %v802 = vsel %vm797, %v769, %v677
        %v803 = vsel %vm797, %v770, %v679
        %v804 = vsel %vm797, %v771, %v681
        %v805 = vsel %vm797, %v772, %v683
        %v806 = vsel %vm797, %v773, %v685
        %v807 = vsel %vm797, %v774, %v687
        %v808 = vsel %vm797, %v775, %v689
        %v809 = vsel %vm797, %v776, %v691
        %v810 = vsel %vm797, %v777, %v693
        %v811 = vsel %vm797, %v778, %v695
        %v812 = vsel %vm797, %v779, %v697
        %v813 = vsel %vm797, %v780, %v699
        %v814 = vsel %vm797, %v781, %v701
        %v815 = vsel %vm797, %v782, %v703
        %v816 = vsel %vm797, %v783, %v705
        %v817 = vsel %vm797, %v784, %v707
        %v818 = vsel %vm797, %v785, %v709
        %v819 = vsel %vm797, %v786, %v711
        %v820 = vsel %vm797, %v787, %v713
        %v821 = vsel %vm797, %v788, %v715
        %v822 = vsel %vm797, %v789, %v717
        %v823 = vsel %vm797, %v790, %v719
        %v824 = vsel %vm797, %v791, %v721
        %v825 = vsel %vm797, %v792, %v723
        %v826 = vsel %vm797, %v793, %v725
        %v827 = vsel %vm797, %v794, %v727
        %v828 = vsel %vm797, %v795, %v729
        %v829 = vsel %vm797, %v796, %v731
        %846 = vrot.lane.b32.xlu0 %v284, 1
        %v847 = vpop.permute.xlu0 %846
        %848 = vrot.lane.b32.xlu0 %v285, 1
        %v849 = vpop.permute.xlu0 %848
        %850 = vrot.lane.b32.xlu0 %v286, 1
        %v851 = vpop.permute.xlu0 %850
        %852 = vrot.lane.b32.xlu0 %v287, 1
        %v853 = vpop.permute.xlu0 %852
        %854 = vrot.lane.b32.xlu0 %v288, 1
        %v855 = vpop.permute.xlu0 %854
        %856 = vrot.lane.b32.xlu0 %v289, 1
        %v857 = vpop.permute.xlu0 %856
        %858 = vrot.lane.b32.xlu0 %v290, 1
        %v859 = vpop.permute.xlu0 %858
        %860 = vrot.lane.b32.xlu0 %v291, 1
        %v861 = vpop.permute.xlu0 %860
        %862 = vrot.lane.b32.xlu0 %v292, 1
        %v863 = vpop.permute.xlu0 %862
        %864 = vrot.lane.b32.xlu0 %v293, 1
        %v865 = vpop.permute.xlu0 %864
        %866 = vrot.lane.b32.xlu0 %v294, 1
        %v867 = vpop.permute.xlu0 %866
        %868 = vrot.lane.b32.xlu0 %v295, 1
        %v869 = vpop.permute.xlu0 %868
        %870 = vrot.lane.b32.xlu0 %v296, 1
        %v871 = vpop.permute.xlu0 %870
        %872 = vrot.lane.b32.xlu0 %v297, 1
        %v873 = vpop.permute.xlu0 %872
        %874 = vrot.lane.b32.xlu0 %v298, 1
        %v875 = vpop.permute.xlu0 %874
        %876 = vrot.lane.b32.xlu0 %v299, 1
        %v877 = vpop.permute.xlu0 %876
        %894 = vrot.lane.b32.xlu0 %v188, 2
        %v895 = vpop.permute.xlu0 %894
        %896 = vrot.lane.b32.xlu0 %v190, 2
        %v897 = vpop.permute.xlu0 %896
        %898 = vrot.lane.b32.xlu0 %v192, 2
        %v899 = vpop.permute.xlu0 %898
        %900 = vrot.lane.b32.xlu0 %v194, 2
        %v901 = vpop.permute.xlu0 %900
        %902 = vrot.lane.b32.xlu0 %v196, 2
        %v903 = vpop.permute.xlu0 %902
        %904 = vrot.lane.b32.xlu0 %v198, 2
        %v905 = vpop.permute.xlu0 %904
        %906 = vrot.lane.b32.xlu0 %v200, 2
        %v907 = vpop.permute.xlu0 %906
        %908 = vrot.lane.b32.xlu0 %v202, 2
        %v909 = vpop.permute.xlu0 %908
        %910 = vrot.lane.b32.xlu0 %v204, 2
        %v911 = vpop.permute.xlu0 %910
        %912 = vrot.lane.b32.xlu0 %v206, 2
        %v913 = vpop.permute.xlu0 %912
        %914 = vrot.lane.b32.xlu0 %v208, 2
        %v915 = vpop.permute.xlu0 %914
        %916 = vrot.lane.b32.xlu0 %v210, 2
        %v917 = vpop.permute.xlu0 %916
        %918 = vrot.lane.b32.xlu0 %v212, 2
        %v919 = vpop.permute.xlu0 %918
        %920 = vrot.lane.b32.xlu0 %v214, 2
        %v921 = vpop.permute.xlu0 %920
        %922 = vrot.lane.b32.xlu0 %v216, 2
        %v923 = vpop.permute.xlu0 %922
        %924 = vrot.lane.b32.xlu0 %v218, 2
        %v925 = vpop.permute.xlu0 %924
        %v942 = vsel %vm764, %v188, %v847
        %v943 = vsel %vm764, %v190, %v849
        %v944 = vsel %vm764, %v192, %v851
        %v945 = vsel %vm764, %v194, %v853
        %v946 = vsel %vm764, %v196, %v855
        %v947 = vsel %vm764, %v198, %v857
        %v948 = vsel %vm764, %v200, %v859
        %v949 = vsel %vm764, %v202, %v861
        %v950 = vsel %vm764, %v204, %v863
        %v951 = vsel %vm764, %v206, %v865
        %v952 = vsel %vm764, %v208, %v867
        %v953 = vsel %vm764, %v210, %v869
        %v954 = vsel %vm764, %v212, %v871
        %v955 = vsel %vm764, %v214, %v873
        %v956 = vsel %vm764, %v216, %v875
        %v957 = vsel %vm764, %v218, %v877
        %v958 = vsel %vm797, %v942, %v895
        %v959 = vsel %vm797, %v943, %v897
        %v960 = vsel %vm797, %v944, %v899
        %v961 = vsel %vm797, %v945, %v901
        %v962 = vsel %vm797, %v946, %v903
        %v963 = vsel %vm797, %v947, %v905
        %v964 = vsel %vm797, %v948, %v907
        %v965 = vsel %vm797, %v949, %v909
        %v966 = vsel %vm797, %v950, %v911
        %v967 = vsel %vm797, %v951, %v913
        %v968 = vsel %vm797, %v952, %v915
        %v969 = vsel %vm797, %v953, %v917
        %v970 = vsel %vm797, %v954, %v919
        %v971 = vsel %vm797, %v955, %v921
        %v972 = vsel %vm797, %v956, %v923
        %v973 = vsel %vm797, %v957, %v925
        %v990 = vrot.slane %v364, 7
        %v991 = vrot.slane %v365, 7
        %v992 = vrot.slane %v366, 7
        %v993 = vrot.slane %v367, 7
        %v994 = vrot.slane %v368, 7
        %v995 = vrot.slane %v369, 7
        %v996 = vrot.slane %v370, 7
        %v997 = vrot.slane %v371, 7
        %v998 = vrot.slane %v372, 7
        %v999 = vrot.slane %v373, 7
        %v1000 = vrot.slane %v374, 7
        %v1001 = vrot.slane %v375, 7
        %v1002 = vrot.slane %v376, 7
        %v1003 = vrot.slane %v377, 7
        %v1004 = vrot.slane %v378, 7
        %v1005 = vrot.slane %v379, 7
        %1006 = vrot.lane.b32.xlu0 %v990, 1
        %v1007 = vpop.permute.xlu0 %1006
        %1008 = vrot.lane.b32.xlu0 %v991, 1
        %v1009 = vpop.permute.xlu0 %1008
        %1010 = vrot.lane.b32.xlu0 %v992, 1
        %v1011 = vpop.permute.xlu0 %1010
        %1012 = vrot.lane.b32.xlu0 %v993, 1
        %v1013 = vpop.permute.xlu0 %1012
        %1014 = vrot.lane.b32.xlu0 %v994, 1
        %v1015 = vpop.permute.xlu0 %1014
        %1016 = vrot.lane.b32.xlu0 %v995, 1
        %v1017 = vpop.permute.xlu0 %1016
        %1018 = vrot.lane.b32.xlu0 %v996, 1
        %v1019 = vpop.permute.xlu0 %1018
        %1020 = vrot.lane.b32.xlu0 %v997, 1
        %v1021 = vpop.permute.xlu0 %1020
        %1022 = vrot.lane.b32.xlu0 %v998, 1
        %v1023 = vpop.permute.xlu0 %1022
        %1024 = vrot.lane.b32.xlu0 %v999, 1
        %v1025 = vpop.permute.xlu0 %1024
        %1026 = vrot.lane.b32.xlu0 %v1000, 1
        %v1027 = vpop.permute.xlu0 %1026
        %1028 = vrot.lane.b32.xlu0 %v1001, 1
        %v1029 = vpop.permute.xlu0 %1028
        %1030 = vrot.lane.b32.xlu0 %v1002, 1
        %v1031 = vpop.permute.xlu0 %1030
        %1032 = vrot.lane.b32.xlu0 %v1003, 1
        %v1033 = vpop.permute.xlu0 %1032
        %1034 = vrot.lane.b32.xlu0 %v1004, 1
        %v1035 = vpop.permute.xlu0 %1034
        %1036 = vrot.lane.b32.xlu0 %v1005, 1
        %v1037 = vpop.permute.xlu0 %1036
        %1054 = vrot.lane.b32.xlu0 %v189, 2
        %v1055 = vpop.permute.xlu0 %1054
        %1056 = vrot.lane.b32.xlu0 %v191, 2
        %v1057 = vpop.permute.xlu0 %1056
        %1058 = vrot.lane.b32.xlu0 %v193, 2
        %v1059 = vpop.permute.xlu0 %1058
        %1060 = vrot.lane.b32.xlu0 %v195, 2
        %v1061 = vpop.permute.xlu0 %1060
        %1062 = vrot.lane.b32.xlu0 %v197, 2
        %v1063 = vpop.permute.xlu0 %1062
        %1064 = vrot.lane.b32.xlu0 %v199, 2
        %v1065 = vpop.permute.xlu0 %1064
        %1066 = vrot.lane.b32.xlu0 %v201, 2
        %v1067 = vpop.permute.xlu0 %1066
        %1068 = vrot.lane.b32.xlu0 %v203, 2
        %v1069 = vpop.permute.xlu0 %1068
        %1070 = vrot.lane.b32.xlu0 %v205, 2
        %v1071 = vpop.permute.xlu0 %1070
        %1072 = vrot.lane.b32.xlu0 %v207, 2
        %v1073 = vpop.permute.xlu0 %1072
        %1074 = vrot.lane.b32.xlu0 %v209, 2
        %v1075 = vpop.permute.xlu0 %1074
        %1076 = vrot.lane.b32.xlu0 %v211, 2
        %v1077 = vpop.permute.xlu0 %1076
        %1078 = vrot.lane.b32.xlu0 %v213, 2
        %v1079 = vpop.permute.xlu0 %1078
        %1080 = vrot.lane.b32.xlu0 %v215, 2
        %v1081 = vpop.permute.xlu0 %1080
        %1082 = vrot.lane.b32.xlu0 %v217, 2
        %v1083 = vpop.permute.xlu0 %1082
        %1084 = vrot.lane.b32.xlu0 %v219, 2
        %v1085 = vpop.permute.xlu0 %1084
        %v1102 = vsel %vm764, %v189, %v1007
        %v1103 = vsel %vm764, %v191, %v1009
        %v1104 = vsel %vm764, %v193, %v1011
        %v1105 = vsel %vm764, %v195, %v1013
        %v1106 = vsel %vm764, %v197, %v1015
        %v1107 = vsel %vm764, %v199, %v1017
        %v1108 = vsel %vm764, %v201, %v1019
        %v1109 = vsel %vm764, %v203, %v1021
        %v1110 = vsel %vm764, %v205, %v1023
        %v1111 = vsel %vm764, %v207, %v1025
        %v1112 = vsel %vm764, %v209, %v1027
        %v1113 = vsel %vm764, %v211, %v1029
        %v1114 = vsel %vm764, %v213, %v1031
        %v1115 = vsel %vm764, %v215, %v1033
        %v1116 = vsel %vm764, %v217, %v1035
        %v1117 = vsel %vm764, %v219, %v1037
        %v1118 = vsel %vm797, %v1102, %v1055
        %v1119 = vsel %vm797, %v1103, %v1057
        %v1120 = vsel %vm797, %v1104, %v1059
        %v1121 = vsel %vm797, %v1105, %v1061
        %v1122 = vsel %vm797, %v1106, %v1063
        %v1123 = vsel %vm797, %v1107, %v1065
        %v1124 = vsel %vm797, %v1108, %v1067
        %v1125 = vsel %vm797, %v1109, %v1069
        %v1126 = vsel %vm797, %v1110, %v1071
        %v1127 = vsel %vm797, %v1111, %v1073
        %v1128 = vsel %vm797, %v1112, %v1075
        %v1129 = vsel %vm797, %v1113, %v1077
        %v1130 = vsel %vm797, %v1114, %v1079
        %v1131 = vsel %vm797, %v1115, %v1081
        %v1132 = vsel %vm797, %v1116, %v1083
        %v1133 = vsel %vm797, %v1117, %v1085
        %vm1166 = vcmask 1040384
        %v1167 = vrot.slane %v798, 7
        %v1168 = vrot.slane %v799, 7
        %v1169 = vsel %vm1166, %v1167, %v1168
        %v1170 = vrot.slane %v800, 7
        %v1171 = vrot.slane %v801, 7
        %v1172 = vsel %vm1166, %v1170, %v1171
        %v1173 = vrot.slane %v802, 7
        %v1174 = vrot.slane %v803, 7
        %v1175 = vsel %vm1166, %v1173, %v1174
        %v1176 = vrot.slane %v804, 7
        %v1177 = vrot.slane %v805, 7
        %v1178 = vsel %vm1166, %v1176, %v1177
        %v1179 = vrot.slane %v806, 7
        %v1180 = vrot.slane %v807, 7
        %v1181 = vsel %vm1166, %v1179, %v1180
        %v1182 = vrot.slane %v808, 7
        %v1183 = vrot.slane %v809, 7
        %v1184 = vsel %vm1166, %v1182, %v1183
        %v1185 = vrot.slane %v810, 7
        %v1186 = vrot.slane %v811, 7
        %v1187 = vsel %vm1166, %v1185, %v1186
        %v1188 = vrot.slane %v812, 7
        %v1189 = vrot.slane %v813, 7
        %v1190 = vsel %vm1166, %v1188, %v1189
        %v1191 = vrot.slane %v814, 7
        %v1192 = vrot.slane %v815, 7
        %v1193 = vsel %vm1166, %v1191, %v1192
        %v1194 = vrot.slane %v816, 7
        %v1195 = vrot.slane %v817, 7
        %v1196 = vsel %vm1166, %v1194, %v1195
        %v1197 = vrot.slane %v818, 7
        %v1198 = vrot.slane %v819, 7
        %v1199 = vsel %vm1166, %v1197, %v1198
        %v1200 = vrot.slane %v820, 7
        %v1201 = vrot.slane %v821, 7
        %v1202 = vsel %vm1166, %v1200, %v1201
        %v1203 = vrot.slane %v822, 7
        %v1204 = vrot.slane %v823, 7
        %v1205 = vsel %vm1166, %v1203, %v1204
        %v1206 = vrot.slane %v824, 7
        %v1207 = vrot.slane %v825, 7
        %v1208 = vsel %vm1166, %v1206, %v1207
        %v1209 = vrot.slane %v826, 7
        %v1210 = vrot.slane %v827, 7
        %v1211 = vsel %vm1166, %v1209, %v1210
        %v1212 = vrot.slane %v828, 7
        %v1213 = vrot.slane %v829, 7
        %v1214 = vsel %vm1166, %v1212, %v1213
        %v1279 = vrot.slane %v1118, 6
        %v1280 = vrot.slane %v1119, 6
        %v1281 = vrot.slane %v1120, 6
        %v1282 = vrot.slane %v1121, 6
        %v1283 = vrot.slane %v1122, 6
        %v1284 = vrot.slane %v1123, 6
        %v1285 = vrot.slane %v1124, 6
        %v1286 = vrot.slane %v1125, 6
        %v1287 = vrot.slane %v1126, 6
        %v1288 = vrot.slane %v1127, 6
        %v1289 = vrot.slane %v1128, 6
        %v1290 = vrot.slane %v1129, 6
        %v1291 = vrot.slane %v1130, 6
        %v1292 = vrot.slane %v1131, 6
        %v1293 = vrot.slane %v1132, 6
        %v1294 = vrot.slane %v1133, 6
        %v1311 = vsel %vm1166, %v958, %v1167
        %v1312 = vsel %vm1166, %v959, %v1170
        %v1313 = vsel %vm1166, %v960, %v1173
        %v1314 = vsel %vm1166, %v961, %v1176
        %v1315 = vsel %vm1166, %v962, %v1179
        %v1316 = vsel %vm1166, %v963, %v1182
        %v1317 = vsel %vm1166, %v964, %v1185
        %v1318 = vsel %vm1166, %v965, %v1188
        %v1319 = vsel %vm1166, %v966, %v1191
        %v1320 = vsel %vm1166, %v967, %v1194
        %v1321 = vsel %vm1166, %v968, %v1197
        %v1322 = vsel %vm1166, %v969, %v1200
        %v1323 = vsel %vm1166, %v970, %v1203
        %v1324 = vsel %vm1166, %v971, %v1206
        %v1325 = vsel %vm1166, %v972, %v1209
        %v1326 = vsel %vm1166, %v973, %v1212
        %v1327 = vsel %vm1166, %v1168, %v1279
        %v1328 = vsel %vm1166, %v1171, %v1280
        %v1329 = vsel %vm1166, %v1174, %v1281
        %v1330 = vsel %vm1166, %v1177, %v1282
        %v1331 = vsel %vm1166, %v1180, %v1283
        %v1332 = vsel %vm1166, %v1183, %v1284
        %v1333 = vsel %vm1166, %v1186, %v1285
        %v1334 = vsel %vm1166, %v1189, %v1286
        %v1335 = vsel %vm1166, %v1192, %v1287
        %v1336 = vsel %vm1166, %v1195, %v1288
        %v1337 = vsel %vm1166, %v1198, %v1289
        %v1338 = vsel %vm1166, %v1201, %v1290
        %v1339 = vsel %vm1166, %v1204, %v1291
        %v1340 = vsel %vm1166, %v1207, %v1292
        %v1341 = vsel %vm1166, %v1210, %v1293
        %v1342 = vsel %vm1166, %v1213, %v1294
        %v1343 = vld [vmem:[%s179] sm:$0x1]
        %v1344 = vld [vmem:[%s179 + $0x1] sm:$0x1]
        %v1345 = vld [vmem:[%s179 + $0x2] sm:$0x1]
        %v1346 = vld [vmem:[%s179 + $0x3] sm:$0x1]
        %v1347 = vand.u32 %v1343, 1
        %v1348 = vand.u32 %v1344, 1
        %v1349 = vand.u32 %v1345, 1
        %v1350 = vand.u32 %v1346, 1
        %vm1351 = vcmp.gt.s32.totalorder %v1347, 0
        %vm1352 = vcmp.gt.s32.totalorder %v1348, 0
        %vm1353 = vcmp.gt.s32.totalorder %v1349, 0
        %vm1354 = vcmp.gt.s32.totalorder %v1350, 0
        %v1355 = vand.u32 %v1343, 2
        %v1356 = vand.u32 %v1344, 2
        %v1357 = vand.u32 %v1345, 2
        %v1358 = vand.u32 %v1346, 2
        %vm1359 = vcmp.gt.s32.totalorder %v1355, 0
        %vm1360 = vcmp.gt.s32.totalorder %v1356, 0
        %vm1361 = vcmp.gt.s32.totalorder %v1357, 0
        %vm1362 = vcmp.gt.s32.totalorder %v1358, 0
        %v1363 = vand.u32 %v1343, 4
        %v1364 = vand.u32 %v1344, 4
        %v1365 = vand.u32 %v1345, 4
        %v1366 = vand.u32 %v1346, 4
        %vm1367 = vcmp.gt.s32.totalorder %v1363, 0
        %vm1368 = vcmp.gt.s32.totalorder %v1364, 0
        %vm1369 = vcmp.gt.s32.totalorder %v1365, 0
        %vm1370 = vcmp.gt.s32.totalorder %v1366, 0
        %v1371 = vand.u32 %v1343, 8
        %v1372 = vand.u32 %v1344, 8
        %v1373 = vand.u32 %v1345, 8
        %v1374 = vand.u32 %v1346, 8
        %vm1375 = vcmp.gt.s32.totalorder %v1371, 0
        %vm1376 = vcmp.gt.s32.totalorder %v1372, 0
        %vm1377 = vcmp.gt.s32.totalorder %v1373, 0
        %vm1378 = vcmp.gt.s32.totalorder %v1374, 0
        %v1379 = vlaneseq
        %v1380 = vshrl.u32 %v1379, 7
        %v1381 = vadd.s32 %v1380, 8
        %v1382 = vadd.s32 %v1380, 16
        %v1383 = vlaneseq
        %v1384 = vand.u32 %v1383, 127
        %vm1385 = vcmp.lt.s32.totalorder %v1380, 1
        %vm1386 = vcmp.lt.s32.totalorder %v1381, 1
        %vm1387 = vcmp.lt.s32.totalorder %v1382, 1
        %v1388 = vsel %vm1351, 1, 0
        %v1389 = vsel %vm1352, 1, 0
        %v1390 = vsel %vm1353, 1, 0
        %v1391 = vsel %vm1354, 1, 0
        %v1392 = vlaneseq
        %v1393 = vshrl.u32 %v1392, 7
        %v1394 = vsub.s32 0, %v1393
        %v1395 = vrot.slane %v1388, %v1394
        %v1396 = vlaneseq
        %v1397 = vshrl.u32 %v1396, 7
        %v1398 = vsub.s32 0, %v1397
        %v1399 = vrot.slane %v1389, %v1398
        %v1400 = vlaneseq
        %v1401 = vshrl.u32 %v1400, 7
        %v1402 = vsub.s32 0, %v1401
        %v1403 = vrot.slane %v1390, %v1402
        %v1404 = vlaneseq
        %v1405 = vshrl.u32 %v1404, 7
        %v1406 = vsub.s32 0, %v1405
        %v1407 = vrot.slane %v1391, %v1406
        %1408 = vset.pattern.permute.xlu0 0
        %1409 = vperm.xlu0 %1408, %v1395
        %v1410 = vpop.permute.xlu0 %1409
        %1411 = vset.pattern.permute.xlu0 0
        %1412 = vperm.xlu0 %1411, %v1399
        %v1413 = vpop.permute.xlu0 %1412
        %1414 = vset.pattern.permute.xlu0 0
        %1415 = vperm.xlu0 %1414, %v1403
        %v1416 = vpop.permute.xlu0 %1415
        %1417 = vset.pattern.permute.xlu0 0
        %1418 = vperm.xlu0 %1417, %v1407
        %v1419 = vpop.permute.xlu0 %1418
        %vm1420 = vcmp.eq.s32.totalorder %v1410, 1
        %vm1421 = vcmp.eq.s32.totalorder %v1413, 1
        %vm1422 = vcmp.eq.s32.totalorder %v1416, 1
        %vm1423 = vcmp.eq.s32.totalorder %v1419, 1
        %v1424 = vsel %vm1385, 1, 0
        %v1425 = vsel %vm1386, 1, 0
        %v1426 = vsel %vm1387, 1, 0
        %vm1427 = vcmp.eq.s32.totalorder %v1424, 1
        %vm1428 = vcmp.eq.s32.totalorder %v1425, 1
        %vm1429 = vcmp.eq.s32.totalorder %v1426, 1
        %vm1430 = vmand %vm1420, %vm1427
        %vm1431 = vmand %vm1420, %vm1428
        %vm1432 = vmand %vm1420, %vm1429
        %vm1433 = vmand %vm1421, %vm1427
        %vm1434 = vmand %vm1421, %vm1428
        %vm1435 = vmand %vm1421, %vm1429
        %vm1436 = vmand %vm1422, %vm1427
        %vm1437 = vmand %vm1422, %vm1428
        %vm1438 = vmand %vm1422, %vm1429
        %vm1439 = vmand %vm1423, %vm1427
        %vm1440 = vmand %vm1423, %vm1428
        %vm1441 = vmand %vm1423, %vm1429
        %vm1442 = vcmp.eq.s32.totalorder %v1380, 17
        %vm1443 = vcmp.eq.s32.totalorder %v1381, 17
        %vm1444 = vcmp.eq.s32.totalorder %v1382, 17
        %v1445 = vsel %vm1359, 1, 0
        %v1446 = vsel %vm1360, 1, 0
        %v1447 = vsel %vm1361, 1, 0
        %v1448 = vsel %vm1362, 1, 0
        %v1449 = vlaneseq
        %v1450 = vshrl.u32 %v1449, 7
        %v1451 = vsub.s32 0, %v1450
        %v1452 = vrot.slane %v1445, %v1451
        %v1453 = vlaneseq
        %v1454 = vshrl.u32 %v1453, 7
        %v1455 = vsub.s32 0, %v1454
        %v1456 = vrot.slane %v1446, %v1455
        %v1457 = vlaneseq
        %v1458 = vshrl.u32 %v1457, 7
        %v1459 = vsub.s32 0, %v1458
        %v1460 = vrot.slane %v1447, %v1459
        %v1461 = vlaneseq
        %v1462 = vshrl.u32 %v1461, 7
        %v1463 = vsub.s32 0, %v1462
        %v1464 = vrot.slane %v1448, %v1463
        %1465 = vset.pattern.permute.xlu0 0
        %1466 = vperm.xlu0 %1465, %v1452
        %v1467 = vpop.permute.xlu0 %1466
        %1468 = vset.pattern.permute.xlu0 0
        %1469 = vperm.xlu0 %1468, %v1456
        %v1470 = vpop.permute.xlu0 %1469
        %1471 = vset.pattern.permute.xlu0 0
        %1472 = vperm.xlu0 %1471, %v1460
        %v1473 = vpop.permute.xlu0 %1472
        %1474 = vset.pattern.permute.xlu0 0
        %1475 = vperm.xlu0 %1474, %v1464
        %v1476 = vpop.permute.xlu0 %1475
        %vm1477 = vcmp.eq.s32.totalorder %v1467, 1
        %vm1478 = vcmp.eq.s32.totalorder %v1470, 1
        %vm1479 = vcmp.eq.s32.totalorder %v1473, 1
        %vm1480 = vcmp.eq.s32.totalorder %v1476, 1
        %v1481 = vsel %vm1442, 1, 0
        %v1482 = vsel %vm1443, 1, 0
        %v1483 = vsel %vm1444, 1, 0
        %vm1484 = vcmp.eq.s32.totalorder %v1481, 1
        %vm1485 = vcmp.eq.s32.totalorder %v1482, 1
        %vm1486 = vcmp.eq.s32.totalorder %v1483, 1
        %vm1487 = vmand %vm1477, %vm1484
        %vm1488 = vmand %vm1477, %vm1485
        %vm1489 = vmand %vm1477, %vm1486
        %vm1490 = vmand %vm1478, %vm1484
        %vm1491 = vmand %vm1478, %vm1485
        %vm1492 = vmand %vm1478, %vm1486
        %vm1493 = vmand %vm1479, %vm1484
        %vm1494 = vmand %vm1479, %vm1485
        %vm1495 = vmand %vm1479, %vm1486
        %vm1496 = vmand %vm1480, %vm1484
        %vm1497 = vmand %vm1480, %vm1485
        %vm1498 = vmand %vm1480, %vm1486
        %vm1499 = vmor %vm1430, %vm1487
        %vm1500 = vmor %vm1431, %vm1488
        %vm1501 = vmor %vm1432, %vm1489
        %vm1502 = vmor %vm1433, %vm1490
        %vm1503 = vmor %vm1434, %vm1491
        %vm1504 = vmor %vm1435, %vm1492
        %vm1505 = vmor %vm1436, %vm1493
        %vm1506 = vmor %vm1437, %vm1494
        %vm1507 = vmor %vm1438, %vm1495
        %vm1508 = vmor %vm1439, %vm1496
        %vm1509 = vmor %vm1440, %vm1497
        %vm1510 = vmor %vm1441, %vm1498
        %vm1511 = vcmp.lt.s32.totalorder %v1384, 1
        %v1512 = vsel %vm1367, 1, 0
        %v1513 = vsel %vm1368, 1, 0
        %v1514 = vsel %vm1369, 1, 0
        %v1515 = vsel %vm1370, 1, 0
        %v1516 = vlaneseq
        %v1517 = vshrl.u32 %v1516, 7
        %v1518 = vsub.s32 0, %v1517
        %v1519 = vrot.slane %v1512, %v1518
        %v1520 = vlaneseq
        %v1521 = vshrl.u32 %v1520, 7
        %v1522 = vsub.s32 0, %v1521
        %v1523 = vrot.slane %v1513, %v1522
        %v1524 = vlaneseq
        %v1525 = vshrl.u32 %v1524, 7
        %v1526 = vsub.s32 0, %v1525
        %v1527 = vrot.slane %v1514, %v1526
        %v1528 = vlaneseq
        %v1529 = vshrl.u32 %v1528, 7
        %v1530 = vsub.s32 0, %v1529
        %v1531 = vrot.slane %v1515, %v1530
        %1532 = vset.pattern.permute.xlu0 0
        %1533 = vperm.xlu0 %1532, %v1519
        %v1534 = vpop.permute.xlu0 %1533
        %1535 = vset.pattern.permute.xlu0 0
        %1536 = vperm.xlu0 %1535, %v1523
        %v1537 = vpop.permute.xlu0 %1536
        %1538 = vset.pattern.permute.xlu0 0
        %1539 = vperm.xlu0 %1538, %v1527
        %v1540 = vpop.permute.xlu0 %1539
        %1541 = vset.pattern.permute.xlu0 0
        %1542 = vperm.xlu0 %1541, %v1531
        %v1543 = vpop.permute.xlu0 %1542
        %vm1544 = vcmp.eq.s32.totalorder %v1534, 1
        %vm1545 = vcmp.eq.s32.totalorder %v1537, 1
        %vm1546 = vcmp.eq.s32.totalorder %v1540, 1
        %vm1547 = vcmp.eq.s32.totalorder %v1543, 1
        %v1548 = vsel %vm1511, 1, 0
        %vm1549 = vcmp.eq.s32.totalorder %v1548, 1
        %vm1550 = vmand %vm1544, %vm1549
        %vm1551 = vmand %vm1545, %vm1549
        %vm1552 = vmand %vm1546, %vm1549
        %vm1553 = vmand %vm1547, %vm1549
        %vm1554 = vmor %vm1499, %vm1550
        %vm1555 = vmor %vm1500, %vm1550
        %vm1556 = vmor %vm1501, %vm1550
        %vm1557 = vmor %vm1502, %vm1551
        %vm1558 = vmor %vm1503, %vm1551
        %vm1559 = vmor %vm1504, %vm1551
        %vm1560 = vmor %vm1505, %vm1552
        %vm1561 = vmor %vm1506, %vm1552
        %vm1562 = vmor %vm1507, %vm1552
        %vm1563 = vmor %vm1508, %vm1553
        %vm1564 = vmor %vm1509, %vm1553
        %vm1565 = vmor %vm1510, %vm1553
        %vm1566 = vcmp.ge.s32.totalorder %v1384, 17
        %v1567 = vsel %vm1375, 1, 0
        %v1568 = vsel %vm1376, 1, 0
        %v1569 = vsel %vm1377, 1, 0
        %v1570 = vsel %vm1378, 1, 0
        %v1571 = vlaneseq
        %v1572 = vshrl.u32 %v1571, 7
        %v1573 = vsub.s32 0, %v1572
        %v1574 = vrot.slane %v1567, %v1573
        %v1575 = vlaneseq
        %v1576 = vshrl.u32 %v1575, 7
        %v1577 = vsub.s32 0, %v1576
        %v1578 = vrot.slane %v1568, %v1577
        %v1579 = vlaneseq
        %v1580 = vshrl.u32 %v1579, 7
        %v1581 = vsub.s32 0, %v1580
        %v1582 = vrot.slane %v1569, %v1581
        %v1583 = vlaneseq
        %v1584 = vshrl.u32 %v1583, 7
        %v1585 = vsub.s32 0, %v1584
        %v1586 = vrot.slane %v1570, %v1585
        %1587 = vset.pattern.permute.xlu0 0
        %1588 = vperm.xlu0 %1587, %v1574
        %v1589 = vpop.permute.xlu0 %1588
        %1590 = vset.pattern.permute.xlu0 0
        %1591 = vperm.xlu0 %1590, %v1578
        %v1592 = vpop.permute.xlu0 %1591
        %1593 = vset.pattern.permute.xlu0 0
        %1594 = vperm.xlu0 %1593, %v1582
        %v1595 = vpop.permute.xlu0 %1594
        %1596 = vset.pattern.permute.xlu0 0
        %1597 = vperm.xlu0 %1596, %v1586
        %v1598 = vpop.permute.xlu0 %1597
        %vm1599 = vcmp.eq.s32.totalorder %v1589, 1
        %vm1600 = vcmp.eq.s32.totalorder %v1592, 1
        %vm1601 = vcmp.eq.s32.totalorder %v1595, 1
        %vm1602 = vcmp.eq.s32.totalorder %v1598, 1
        %v1603 = vsel %vm1566, 1, 0
        %vm1604 = vcmp.eq.s32.totalorder %v1603, 1
        %vm1605 = vmand %vm1599, %vm1604
        %vm1606 = vmand %vm1600, %vm1604
        %vm1607 = vmand %vm1601, %vm1604
        %vm1608 = vmand %vm1602, %vm1604
        %vm1609 = vmor %vm1554, %vm1605
        %vm1610 = vmor %vm1555, %vm1605
        %vm1611 = vmor %vm1556, %vm1605
        %vm1612 = vmor %vm1557, %vm1606
        %vm1613 = vmor %vm1558, %vm1606
        %vm1614 = vmor %vm1559, %vm1606
        %vm1615 = vmor %vm1560, %vm1607
        %vm1616 = vmor %vm1561, %vm1607
        %vm1617 = vmor %vm1562, %vm1607
        %vm1618 = vmor %vm1563, %vm1608
        %vm1619 = vmor %vm1564, %vm1608
        %vm1620 = vmor %vm1565, %vm1608
        %v1621 = vsel %vm1609, 1, 0
        %v1622 = vsel %vm1610, 1, 0
        %v1623 = vsel %vm1611, 1, 0
        %v1624 = vsel %vm1612, 1, 0
        %v1625 = vsel %vm1613, 1, 0
        %v1626 = vsel %vm1614, 1, 0
        %v1627 = vsel %vm1615, 1, 0
        %v1628 = vsel %vm1616, 1, 0
        %v1629 = vsel %vm1617, 1, 0
        %v1630 = vsel %vm1618, 1, 0
        %v1631 = vsel %vm1619, 1, 0
        %v1632 = vsel %vm1620, 1, 0
        %vm1633 = vcmp.eq.s32.totalorder %v1621, 1
        %vm1634 = vcmp.eq.s32.totalorder %v1622, 1
        %vm1635 = vcmp.eq.s32.totalorder %v1623, 1
        %vm1636 = vcmp.eq.s32.totalorder %v1624, 1
        %vm1637 = vcmp.eq.s32.totalorder %v1625, 1
        %vm1638 = vcmp.eq.s32.totalorder %v1626, 1
        %vm1639 = vcmp.eq.s32.totalorder %v1627, 1
        %vm1640 = vcmp.eq.s32.totalorder %v1628, 1
        %vm1641 = vcmp.eq.s32.totalorder %v1629, 1
        %vm1642 = vcmp.eq.s32.totalorder %v1630, 1
        %vm1643 = vcmp.eq.s32.totalorder %v1631, 1
        %vm1644 = vcmp.eq.s32.totalorder %v1632, 1
        %v1645 = vsel %vm1633, 0.0, %v1311
        %v1646 = vsel %vm1634, 0.0, %v1169
        %v1647 = vsel %vm1635, 0.0, %v1327
        %v1648 = vsel %vm1633, 0.0, %v1312
        %v1649 = vsel %vm1634, 0.0, %v1172
        %v1650 = vsel %vm1635, 0.0, %v1328
        %v1651 = vsel %vm1633, 0.0, %v1313
        %v1652 = vsel %vm1634, 0.0, %v1175
        %v1653 = vsel %vm1635, 0.0, %v1329
        %v1654 = vsel %vm1633, 0.0, %v1314
        %v1655 = vsel %vm1634, 0.0, %v1178
        %v1656 = vsel %vm1635, 0.0, %v1330
        %v1657 = vsel %vm1636, 0.0, %v1315
        %v1658 = vsel %vm1637, 0.0, %v1181
        %v1659 = vsel %vm1638, 0.0, %v1331
        %v1660 = vsel %vm1636, 0.0, %v1316
        %v1661 = vsel %vm1637, 0.0, %v1184
        %v1662 = vsel %vm1638, 0.0, %v1332
        %v1663 = vsel %vm1636, 0.0, %v1317
        %v1664 = vsel %vm1637, 0.0, %v1187
        %v1665 = vsel %vm1638, 0.0, %v1333
        %v1666 = vsel %vm1636, 0.0, %v1318
        %v1667 = vsel %vm1637, 0.0, %v1190
        %v1668 = vsel %vm1638, 0.0, %v1334
        %v1669 = vsel %vm1639, 0.0, %v1319
        %v1670 = vsel %vm1640, 0.0, %v1193
        %v1671 = vsel %vm1641, 0.0, %v1335
        %v1672 = vsel %vm1639, 0.0, %v1320
        %v1673 = vsel %vm1640, 0.0, %v1196
        %v1674 = vsel %vm1641, 0.0, %v1336
        %v1675 = vsel %vm1639, 0.0, %v1321
        %v1676 = vsel %vm1640, 0.0, %v1199
        %v1677 = vsel %vm1641, 0.0, %v1337
        %v1678 = vsel %vm1639, 0.0, %v1322
        %v1679 = vsel %vm1640, 0.0, %v1202
        %v1680 = vsel %vm1641, 0.0, %v1338
        %v1681 = vsel %vm1642, 0.0, %v1323
        %v1682 = vsel %vm1643, 0.0, %v1205
        %v1683 = vsel %vm1644, 0.0, %v1339
        %v1684 = vsel %vm1642, 0.0, %v1324
        %v1685 = vsel %vm1643, 0.0, %v1208
        %v1686 = vsel %vm1644, 0.0, %v1340
        %v1687 = vsel %vm1642, 0.0, %v1325
        %v1688 = vsel %vm1643, 0.0, %v1211
        %v1689 = vsel %vm1644, 0.0, %v1341
        %v1690 = vsel %vm1642, 0.0, %v1326
        %v1691 = vsel %vm1643, 0.0, %v1214
        %v1692 = vsel %vm1644, 0.0, %v1342
        %vm1693 = vcmask 146432
        %1694 = vst.msk [vmem:[%s186] sm:$0xff] %vm1693, %v1645
        %1695 = vst.msk [vmem:[%s186 + $0x8] sm:$0xff] %vm1693, %v1646
        %vm1696 = vcmask 140288
        %1697 = vst.msk [vmem:[%s186 + $0x10] sm:$0x3] %vm1696, %v1647
        %1698 = vst.msk [vmem:[%s186 + $0x18] sm:$0xff] %vm1693, %v1648
        %1699 = vst.msk [vmem:[%s186 + $0x20] sm:$0xff] %vm1693, %v1649
        %1700 = vst.msk [vmem:[%s186 + $0x28] sm:$0x3] %vm1696, %v1650
        %1701 = vst.msk [vmem:[%s186 + $0x30] sm:$0xff] %vm1693, %v1651
        %1702 = vst.msk [vmem:[%s186 + $0x38] sm:$0xff] %vm1693, %v1652
        %1703 = vst.msk [vmem:[%s186 + $0x40] sm:$0x3] %vm1696, %v1653
        %1704 = vst.msk [vmem:[%s186 + $0x48] sm:$0xff] %vm1693, %v1654
        %1705 = vst.msk [vmem:[%s186 + $0x50] sm:$0xff] %vm1693, %v1655
        %1706 = vst.msk [vmem:[%s186 + $0x58] sm:$0x3] %vm1696, %v1656
        %1707 = vst.msk [vmem:[%s186 + $0x60] sm:$0xff] %vm1693, %v1657
        %1708 = vst.msk [vmem:[%s186 + $0x68] sm:$0xff] %vm1693, %v1658
        %1709 = vst.msk [vmem:[%s186 + $0x70] sm:$0x3] %vm1696, %v1659
        %1710 = vst.msk [vmem:[%s186 + $0x78] sm:$0xff] %vm1693, %v1660
        %1711 = vst.msk [vmem:[%s186 + $0x80] sm:$0xff] %vm1693, %v1661
        %1712 = vst.msk [vmem:[%s186 + $0x88] sm:$0x3] %vm1696, %v1662
        %1713 = vst.msk [vmem:[%s186 + $0x90] sm:$0xff] %vm1693, %v1663
        %1714 = vst.msk [vmem:[%s186 + $0x98] sm:$0xff] %vm1693, %v1664
        %1715 = vst.msk [vmem:[%s186 + $0xa0] sm:$0x3] %vm1696, %v1665
        %1716 = vst.msk [vmem:[%s186 + $0xa8] sm:$0xff] %vm1693, %v1666
        %1717 = vst.msk [vmem:[%s186 + $0xb0] sm:$0xff] %vm1693, %v1667
        %1718 = vst.msk [vmem:[%s186 + $0xb8] sm:$0x3] %vm1696, %v1668
        %1719 = vst.msk [vmem:[%s186 + $0xc0] sm:$0xff] %vm1693, %v1669
        %1720 = vst.msk [vmem:[%s186 + $0xc8] sm:$0xff] %vm1693, %v1670
        %1721 = vst.msk [vmem:[%s186 + $0xd0] sm:$0x3] %vm1696, %v1671
        %1722 = vst.msk [vmem:[%s186 + $0xd8] sm:$0xff] %vm1693, %v1672
        %1723 = vst.msk [vmem:[%s186 + $0xe0] sm:$0xff] %vm1693, %v1673
        %1724 = vst.msk [vmem:[%s186 + $0xe8] sm:$0x3] %vm1696, %v1674
        %1725 = vst.msk [vmem:[%s186 + $0xf0] sm:$0xff] %vm1693, %v1675
        %1726 = vst.msk [vmem:[%s186 + $0xf8] sm:$0xff] %vm1693, %v1676
        %1727 = vst.msk [vmem:[%s186 + $0x100] sm:$0x3] %vm1696, %v1677
        %1728 = vst.msk [vmem:[%s186 + $0x108] sm:$0xff] %vm1693, %v1678
        %1729 = vst.msk [vmem:[%s186 + $0x110] sm:$0xff] %vm1693, %v1679
        %1730 = vst.msk [vmem:[%s186 + $0x118] sm:$0x3] %vm1696, %v1680
        %1731 = vst.msk [vmem:[%s186 + $0x120] sm:$0xff] %vm1693, %v1681
        %1732 = vst.msk [vmem:[%s186 + $0x128] sm:$0xff] %vm1693, %v1682
        %1733 = vst.msk [vmem:[%s186 + $0x130] sm:$0x3] %vm1696, %v1683
        %1734 = vst.msk [vmem:[%s186 + $0x138] sm:$0xff] %vm1693, %v1684
        %1735 = vst.msk [vmem:[%s186 + $0x140] sm:$0xff] %vm1693, %v1685
        %1736 = vst.msk [vmem:[%s186 + $0x148] sm:$0x3] %vm1696, %v1686
        %1737 = vst.msk [vmem:[%s186 + $0x150] sm:$0xff] %vm1693, %v1687
        %1738 = vst.msk [vmem:[%s186 + $0x158] sm:$0xff] %vm1693, %v1688
        %1739 = vst.msk [vmem:[%s186 + $0x160] sm:$0x3] %vm1696, %v1689
        %1740 = vst.msk [vmem:[%s186 + $0x168] sm:$0xff] %vm1693, %v1690
        %1741 = vst.msk [vmem:[%s186 + $0x170] sm:$0xff] %vm1693, %v1691
        %1742 = vst.msk [vmem:[%s186 + $0x178] sm:$0x3] %vm1696, %v1692
        %s1743 = smul.u32 4, %s16
        %p1744 = scmp.lt.s32.totalorder %s1743, 7
        %s1745 = scalar_select %p1744, %s1743, 7
        %s1746 = smul.addr %s1745, 12
        %s1747 = smul.addr %s1746, 8
        %s1748 = scalar_lea.vmem %s2, %s1747
        // Predicated region
        $region33: #{tpu_custom_call.1} parent=27 // pred_check
          %p1749 = pneg %p86
        $region34: #{tpu_custom_call.1} parent=27 // pred_check_branch
          %1751 = sbr.rel (%p1749) target = $region36
        $region35: #{tpu_custom_call.1} parent=27 // pred_region
          %s1752 = smul.u32 4, %s16
        $region36: #{tpu_custom_call.1} parent=27 // pred_fallthru
          _
      $region28: #{tpu_custom_call.1} parent=5 // pred_fallthru
        _
      %p1753 = scmp.le.s32.totalorder 2, %s11
      // Predicated region
      $region37: #{tpu_custom_call.1} parent=5 // pred_check
        %p1754 = pneg %p1753
      $region38: #{tpu_custom_call.1} parent=5 // pred_check_branch
        %1756 = sbr.rel (%p1754) target = $region40
      $region39: #{tpu_custom_call.1} parent=5 // pred_region
        %s1757 = ssub.s32 %s11, 2
        // Predicated region
        $region41: #{tpu_custom_call.1} parent=39 // pred_check
          %p1758 = pneg %p92
        $region42: #{tpu_custom_call.1} parent=39 // pred_check_branch
          %1760 = sbr.rel (%p1758) target = $region44
        $region43: #{tpu_custom_call.1} parent=39 // pred_region
          %s1761 = smul.u32 4, %s17
          %p1762 = scmp.lt.s32.totalorder %s1761, 7
          %s1763 = scalar_select %p1762, %s1761, 7
          %s1764 = smul.addr %s1763, 12
          %s1765 = smul.addr %s1764, 8
          %s1766 = scalar_lea.vmem %s2, %s1765
        $region44: #{tpu_custom_call.1} parent=39 // pred_fallthru
          _
      $region40: #{tpu_custom_call.1} parent=5 // pred_fallthru
        _
    $region6: #{tpu_custom_call.1} parent=1 // loop_footer
      %s15 = sadd.s32 1, %s11
    $region7: #{tpu_custom_call.1} parent=1 // loop_footer_branch
      %10 = sbr.rel target = $region3
    $region8: #{tpu_custom_call.1} parent=1 // loop_exit
      _
    %1767 = vsyncpa [#allocation3], 1
    %s1768 = scalar_lea.sflag [#allocation3], 1
    %1769 = vsyncpa %s1768, 1

</llo_original>
